<compile_context>
chip_gen: v5e
topology: v5e:2x2
jax: 0.10.0
libtpu: 0.0.40
codegen_flags: <defaults>
</compile_context>

<pallas_src>
import jax
import jax.numpy as jnp
from jax import lax
from jax.experimental import pallas as pl
from jax.experimental.pallas import tpu as pltpu

# ---------------- configuration (small, consistent with the module) -------------
D_MODEL = 32
NUM_HEADS = 4
K_CLIP = 4
DFF = 64
BATCH = 2
SEQ = 8

D_HEAD = D_MODEL // NUM_HEADS
N_TOK = BATCH * SEQ                 # 16 flattened tokens
N_REL = 2 * K_CLIP + 1              # 9 relative-position buckets
HN = NUM_HEADS * N_TOK              # 64 flattened (head, token) rows
HD = NUM_HEADS * D_MODEL            # 128 block-diagonal contraction width
SR = SEQ * N_REL                    # 72 expanded (query-position, rel-bucket) width
SCALE = 1.0 / float(D_HEAD) ** 0.5
LN_EPS = 1e-5

# ------------------------- packed constant-slab layout ---------------------------
SLAB_WIDTH = 128
_SLAB_SPECS = [
    # (name, rows, width) — all row counts are multiples of 8 (sublane-tile aligned)
    ("replmat", D_MODEL, HD),        # (32, 128) lane-replication matrix [I I I I]
    ("bd_mask", HN, HD),             # (64, 128) block-diagonal head mask
    ("wqs", HD, D_HEAD),             # (128, 8) per-head Wq stacked on the H*D axis
    ("wks", HD, D_HEAD),
    ("wvs", HD, D_HEAD),
    ("bq", HN, D_HEAD),              # (64, 8) per-row-block biases
    ("bk", HN, D_HEAD),
    ("bv", HN, D_HEAD),
    ("bias", HN, HN),                # (64, 64) additive mask (head/batch/padding)
    ("relk", D_HEAD, SR),            # (8, 72)  rel_k^T replicated per query position
    ("posmask", HN, SR),             # (64, 72) query-position selector
    ("scat", SR, HN),                # (72, 64) (pos, bucket) -> key scatter
    ("scatt", HN, SR),               # (64, 72) its transpose (stored, not transposed in-kernel)
    ("relv", SR, D_HEAD),            # (72, 8)  rel_v replicated per query position
    ("wo", D_MODEL, D_MODEL),        # (32, 32)
    ("vec", 8, 64),                  # bo / b1 / g1 / be1 / b2 / g2 / be2 rows
    ("w1", D_MODEL, DFF),            # (32, 64)
    ("w2", DFF, D_MODEL),            # (64, 32)
]
_SLAB_LAYOUT = {}
_off = 0
for _name, _rows, _width in _SLAB_SPECS:
    _SLAB_LAYOUT[_name] = (_off, _rows, _width)
    _off += _rows
SLAB_ROWS = _off                     # 1152 rows -> ~0.6 MiB, one DMA


def _pad_width(a):
    a = jnp.asarray(a, jnp.float32)
    return jnp.pad(a, ((0, 0), (0, SLAB_WIDTH - a.shape[1])))


def build_constant_slab(params, mask):
    """All mask/param-derived constants packed into one (SLAB_ROWS, 128) f32 slab.

    Built ONCE per (params, mask) and closed over by the jitted forward, so nothing
    here runs on the per-call launch path.
    """
    H, dh, D, N, S, R = NUM_HEADS, D_HEAD, D_MODEL, N_TOK, SEQ, N_REL

    head_of_row = jnp.arange(HN) // N        # head index of a flattened score row/col
    tok_of_row = jnp.arange(HN) % N          # token index
    bat_of_row = tok_of_row // S             # batch index
    pos_of_row = tok_of_row % S              # in-sequence position

    pieces = {}

    # lane-replication matrix: x (N, D) @ replmat -> (N, H*D) (D-wide copies)
    pieces["replmat"] = jnp.tile(jnp.eye(D, dtype=jnp.float32), (1, H))

    # block-diagonal mask selecting lane block h for row block h
    col_head = jnp.arange(HD) // D
    pieces["bd_mask"] = (head_of_row[:, None] == col_head[None, :]).astype(jnp.float32)

    # per-head projection weights stacked along the H*D contraction dim:
    # W[h*D + c, d] = W_full[c, h*dh + d]
    def stack_heads(w):
        return jnp.asarray(w, jnp.float32).reshape(D, H, dh).transpose(1, 0, 2).reshape(HD, dh)

    pieces["wqs"] = stack_heads(params["wq"])
    pieces["wks"] = stack_heads(params["wk"])
    pieces["wvs"] = stack_heads(params["wv"])

    def flat_bias(b):                        # (1, D) -> (H*N, dh), repeated per row block
        return jnp.repeat(jnp.asarray(b, jnp.float32).reshape(H, dh), N, axis=0)

    pieces["bq"] = flat_bias(params["bq"])
    pieces["bk"] = flat_bias(params["bk"])
    pieces["bv"] = flat_bias(params["bv"])

    # additive attention bias over the flattened (H*N, H*N) score matrix:
    # 0 for same-head & same-batch & unmasked key, -1e9 otherwise.
    same_head = head_of_row[:, None] == head_of_row[None, :]
    same_batch = bat_of_row[:, None] == bat_of_row[None, :]
    key_ok = (jnp.asarray(mask, jnp.float32).reshape(N) > 0)[tok_of_row]
    valid = same_head & same_batch & key_ok[None, :]
    pieces["bias"] = jnp.where(valid, 0.0, -1e9).astype(jnp.float32)

    # Shaw relative-position tables on a compact (query-position, rel-bucket) axis of
    # width S*R = 72.  No (N, N, R) one-hot is ever materialized.
    s_of_exp = jnp.arange(SR) // R           # query position of an expanded column
    r_of_exp = jnp.arange(SR) % R            # rel bucket of an expanded column
    pieces["relk"] = jnp.tile(jnp.asarray(params["rel_k"], jnp.float32).T, (1, S))      # (dh, SR)
    pieces["posmask"] = (pos_of_row[:, None] == s_of_exp[None, :]).astype(jnp.float32)  # (HN, SR)
    rel_bucket = jnp.clip(pos_of_row[None, :] - s_of_exp[:, None], -K_CLIP, K_CLIP) + K_CLIP
    pieces["scat"] = (rel_bucket == r_of_exp[:, None]).astype(jnp.float32)              # (SR, HN)
    pieces["scatt"] = pieces["scat"].T                                                  # (HN, SR)
    pieces["relv"] = jnp.tile(jnp.asarray(params["rel_v"], jnp.float32), (S, 1))        # (SR, dh)

    pieces["wo"] = jnp.asarray(params["wo"], jnp.float32)

    vec = jnp.zeros((8, 64), jnp.float32)
    vec = vec.at[0, :D].set(params["bo"][0])
    vec = vec.at[1, :DFF].set(params["b1"][0])
    vec = vec.at[2, :D].set(params["g1"][0])
    vec = vec.at[3, :D].set(params["be1"][0])
    vec = vec.at[4, :D].set(params["b2"][0])
    vec = vec.at[5, :D].set(params["g2"][0])
    vec = vec.at[6, :D].set(params["be2"][0])
    pieces["vec"] = vec

    pieces["w1"] = jnp.asarray(params["w1"], jnp.float32)
    pieces["w2"] = jnp.asarray(params["w2"], jnp.float32)

    rows = []
    for name, r, w in _SLAB_SPECS:
        piece = pieces[name]
        assert piece.shape == (r, w), (name, piece.shape, (r, w))
        rows.append(_pad_width(piece))
    return jnp.concatenate(rows, axis=0)     # (SLAB_ROWS, 128)


# ------------------------------- Pallas kernel ----------------------------------
def encoder_kernel(x_ref, slab_ref, o_ref):
    H, dh, D, N = NUM_HEADS, D_HEAD, D_MODEL, N_TOK

    def tab(name):
        off, rows, width = _SLAB_LAYOUT[name]
        return slab_ref[off:off + rows, 0:width]         # static slice -> free view + load

    x = x_ref[...]                                                                  # (N, D)

    # ---- block-diagonal replicated input (MXU replicate + VPU mask, no relayouts) ----
    x_rep = jnp.dot(x, tab("replmat"), preferred_element_type=jnp.float32)          # (N, H*D)
    x_bd = jnp.concatenate([x_rep] * H, axis=0) * tab("bd_mask")                    # (HN, HD)

    # ---- head-flat Q/K/V: dense (64,128)x(128,8) MXU matmuls ----
    q = jnp.dot(x_bd, tab("wqs"), preferred_element_type=jnp.float32) + tab("bq")   # (HN, dh)
    k = jnp.dot(x_bd, tab("wks"), preferred_element_type=jnp.float32) + tab("bk")
    v = jnp.dot(x_bd, tab("wvs"), preferred_element_type=jnp.float32) + tab("bv")

    # ---- scores: content (dense 64x8x64) + Shaw relative position (dense via scatter) ----
    scores = lax.dot_general(q, k, (((1,), (1,)), ((), ())),
                             preferred_element_type=jnp.float32)                    # (HN, HN)
    rk = jnp.dot(q, tab("relk"), preferred_element_type=jnp.float32) * tab("posmask")   # (HN, SR)
    scores = scores + jnp.dot(rk, tab("scat"), preferred_element_type=jnp.float32)
    scores = scores * SCALE + tab("bias")

    # ---- softmax over keys; cross-head / cross-batch / padded entries underflow to 0 ----
    scores = scores - jnp.max(scores, axis=-1, keepdims=True)
    p = jnp.exp(scores)
    p = p / jnp.sum(p, axis=-1, keepdims=True)                                      # (HN, HN)

    # ---- attention values: content + Shaw relative values (all dense MXU matmuls) ----
    out_v = jnp.dot(p, v, preferred_element_type=jnp.float32)                       # (HN, dh)
    pr = jnp.dot(p, tab("scatt"), preferred_element_type=jnp.float32) * tab("posmask")
    out_r = jnp.dot(pr, tab("relv"), preferred_element_type=jnp.float32)            # (HN, dh)
    ho = out_v + out_r

    # ---- output projection: sublane-tile-aligned head slices (free) + MXU, reduce heads ----
    wo = tab("wo")                                                                  # (D, D)
    vec = tab("vec")                                                                # (8, 64)
    attn = vec[0:1, :D]                                                             # bo
    for h in range(H):
        attn = attn + jnp.dot(ho[h * N:(h + 1) * N, :], wo[h * dh:(h + 1) * dh, :],
                              preferred_element_type=jnp.float32)                   # (N, D)

    # ---- residual + LayerNorm 1 ----
    y = x + attn
    mu = jnp.mean(y, axis=-1, keepdims=True)
    var = jnp.mean((y - mu) ** 2, axis=-1, keepdims=True)
    y = (y - mu) * lax.rsqrt(var + LN_EPS) * vec[2:3, :D] + vec[3:4, :D]

    # ---- FeedForward: Linear -> ReLU -> Linear ----
    h1 = jnp.maximum(
        jnp.dot(y, tab("w1"), preferred_element_type=jnp.float32) + vec[1:2, :DFF], 0.0)
    f = jnp.dot(h1, tab("w2"), preferred_element_type=jnp.float32) + vec[4:5, :D]

    # ---- residual + LayerNorm 2 ----
    z = y + f
    mu2 = jnp.mean(z, axis=-1, keepdims=True)
    var2 = jnp.mean((z - mu2) ** 2, axis=-1, keepdims=True)
    z = (z - mu2) * lax.rsqrt(var2 + LN_EPS) * vec[5:6, :D] + vec[6:7, :D]

    o_ref[...] = z.astype(o_ref.dtype)


# ------------------------------- wrapper -----------------------------------------
def make_encoder_forward(params, mask):
    """Precompute all (params, mask)-derived constants ONCE and return a jitted
    forward(x).  The per-call path is: reshape -> single pallas_call (3 DMAs) -> reshape."""
    slab = build_constant_slab(params, mask)             # built once, closed over
    vmem = pl.BlockSpec(memory_space=pltpu.MemorySpace.VMEM)

    call = pl.pallas_call(
        encoder_kernel,
        out_shape=jax.ShapeDtypeStruct((N_TOK, D_MODEL), jnp.float32),
        in_specs=[vmem, vmem],
        out_specs=vmem,
        # Single invocation, no grid: the whole problem is a few hundred KiB of VMEM.
        # (Re-introduce a "parallel" query-tile grid axis only if B*S grows enough that
        #  per-step work is >= tens of microseconds.)
    )

    @jax.jit
    def forward(x):
        out = call(x.reshape(N_TOK, D_MODEL), slab)
        return out.reshape(BATCH, SEQ, D_MODEL)

    return forward


# ------------------------------ pure-JAX reference --------------------------------
def encoder_ref(x, mask, params):
    B, S, D = x.shape
    H, dh = NUM_HEADS, D_HEAD
    pos = jnp.arange(S)
    rel_idx = jnp.clip(pos[None, :] - pos[:, None], -K_CLIP, K_CLIP) + K_CLIP
    relk_g = params["rel_k"][rel_idx]
    relv_g = params["rel_v"][rel_idx]

    q = x @ params["wq"] + params["bq"]
    k = x @ params["wk"] + params["bk"]
    v = x @ params["wv"] + params["bv"]
    qh = q.reshape(B, S, H, dh).transpose(0, 2, 1, 3)
    kh = k.reshape(B, S, H, dh).transpose(0, 2, 1, 3)
    vh = v.reshape(B, S, H, dh).transpose(0, 2, 1, 3)

    scores = jnp.einsum("bhid,bhjd->bhij", qh, kh)
    scores = scores + jnp.einsum("bhid,ijd->bhij", qh, relk_g)
    scores = scores / jnp.sqrt(jnp.float32(dh))
    scores = scores + (mask.astype(jnp.float32)[:, None, None, :] - 1.0) * 1e9
    p = jax.nn.softmax(scores, axis=-1)

    out = jnp.einsum("bhij,bhjd->bhid", p, vh) + jnp.einsum("bhij,ijd->bhid", p, relv_g)
    out = out.transpose(0, 2, 1, 3).reshape(B, S, D) @ params["wo"] + params["bo"]

    def ln(t, g, b):
        mu = jnp.mean(t, axis=-1, keepdims=True)
        var = jnp.mean((t - mu) ** 2, axis=-1, keepdims=True)
        return (t - mu) * jax.lax.rsqrt(var + LN_EPS) * g + b

    y = ln(x + out, params["g1"], params["be1"])
    f = jnp.maximum(y @ params["w1"] + params["b1"], 0.0) @ params["w2"] + params["b2"]
    return ln(y + f, params["g2"], params["be2"])


# ------------------------------------ main -----------------------------------------
def make_params(key):
    ks = jax.random.split(key, 12)
    s = 0.05
    return {
        "wq": s * jax.random.normal(ks[0], (D_MODEL, D_MODEL), jnp.float32),
        "bq": jnp.zeros((1, D_MODEL), jnp.float32),
        "wk": s * jax.random.normal(ks[1], (D_MODEL, D_MODEL), jnp.float32),
        "bk": jnp.zeros((1, D_MODEL), jnp.float32),
        "wv": s * jax.random.normal(ks[2], (D_MODEL, D_MODEL), jnp.float32),
        "bv": jnp.zeros((1, D_MODEL), jnp.float32),
        "wo": s * jax.random.normal(ks[3], (D_MODEL, D_MODEL), jnp.float32),
        "bo": s * jax.random.normal(ks[4], (1, D_MODEL), jnp.float32),
        "rel_k": s * jax.random.normal(ks[5], (2 * K_CLIP + 1, D_HEAD), jnp.float32),
        "rel_v": s * jax.random.normal(ks[6], (2 * K_CLIP + 1, D_HEAD), jnp.float32),
        "g1": jnp.ones((1, D_MODEL), jnp.float32),
        "be1": jnp.zeros((1, D_MODEL), jnp.float32),
        "w1": s * jax.random.normal(ks[7], (D_MODEL, DFF), jnp.float32),
        "b1": s * jax.random.normal(ks[8], (1, DFF), jnp.float32),
        "w2": s * jax.random.normal(ks[9], (DFF, D_MODEL), jnp.float32),
        "b2": s * jax.random.normal(ks[10], (1, D_MODEL), jnp.float32),
        "g2": jnp.ones((1, D_MODEL), jnp.float32),
        "be2": jnp.zeros((1, D_MODEL), jnp.float32),
    }


if __name__ == "__main__":
    root = jax.random.PRNGKey(0)
    kx, kp = jax.random.split(root)

    x = jax.random.normal(kx, (BATCH, SEQ, D_MODEL), jnp.float32)
    mask = jnp.ones((BATCH, SEQ), jnp.float32).at[1, -2:].set(0.0)  # pad last 2 keys of batch 1
    params = make_params(kp)

    forward = make_encoder_forward(params, mask)        # constants precomputed once here
    out = jax.block_until_ready(forward(x))

    ref = encoder_ref(x, mask, params)
    assert out.shape == (BATCH, SEQ, D_MODEL)
    assert jnp.allclose(out, ref, atol=2e-4, rtol=2e-4), "mismatch vs JAX reference"

    print("KERNEL_OK")
</pallas_src>

<mosaic_0001>
module attributes {stable_mosaic.version = 11 : i64} {
  func.func @encoder_kernel(%arg0: memref<16x32xf32, #tpu.memory_space<vmem>>, %arg1: memref<1152x128xf32, #tpu.memory_space<vmem>>, %arg2: memref<16x32xf32, #tpu.memory_space<vmem>>) attributes {dimension_semantics = [], scalar_prefetch = 0 : i64, scratch_operands = 0 : i64, tpu.core_type = #tpu.core_type<tc>} {
    %c0 = arith.constant 0 : index
    %c0_0 = arith.constant 0 : index
    %0 = vector.load %arg0[%c0, %c0_0] : memref<16x32xf32, #tpu.memory_space<vmem>>, vector<16x32xf32>
    %c0_1 = arith.constant 0 : index
    %c0_2 = arith.constant 0 : index
    %1 = vector.load %arg1[%c0_1, %c0_2] : memref<1152x128xf32, #tpu.memory_space<vmem>>, vector<32x128xf32>
    %cst = arith.constant dense<0.000000e+00> : vector<16x128xf32>
    %2 = tpu.matmul %0, %1, %cst {dimension_numbers = #tpu.dot_dimension_numbers<[1], [0], [0], [1], [0, 0, 1, 1], [], []>} : vector<16x32xf32>, vector<32x128xf32>, vector<16x128xf32> -> vector<16x128xf32>
    %3 = tpu.concatenate %2, %2, %2, %2 in 0 : vector<16x128xf32>, vector<16x128xf32>, vector<16x128xf32>, vector<16x128xf32> -> vector<64x128xf32>
    %c32 = arith.constant 32 : index
    %c0_3 = arith.constant 0 : index
    %4 = vector.load %arg1[%c32, %c0_3] : memref<1152x128xf32, #tpu.memory_space<vmem>>, vector<64x128xf32>
    %5 = arith.mulf %3, %4 : vector<64x128xf32>
    %c96 = arith.constant 96 : index
    %c0_4 = arith.constant 0 : index
    %6 = vector.load %arg1[%c96, %c0_4] : memref<1152x128xf32, #tpu.memory_space<vmem>>, vector<128x8xf32>
    %cst_5 = arith.constant dense<0.000000e+00> : vector<64x8xf32>
    %7 = tpu.matmul %5, %6, %cst_5 {dimension_numbers = #tpu.dot_dimension_numbers<[1], [0], [0], [1], [0, 0, 1, 1], [], []>} : vector<64x128xf32>, vector<128x8xf32>, vector<64x8xf32> -> vector<64x8xf32>
    %c480 = arith.constant 480 : index
    %c0_6 = arith.constant 0 : index
    %8 = vector.load %arg1[%c480, %c0_6] : memref<1152x128xf32, #tpu.memory_space<vmem>>, vector<64x8xf32>
    %9 = arith.addf %7, %8 : vector<64x8xf32>
    %c224 = arith.constant 224 : index
    %c0_7 = arith.constant 0 : index
    %10 = vector.load %arg1[%c224, %c0_7] : memref<1152x128xf32, #tpu.memory_space<vmem>>, vector<128x8xf32>
    %cst_8 = arith.constant dense<0.000000e+00> : vector<64x8xf32>
    %11 = tpu.matmul %5, %10, %cst_8 {dimension_numbers = #tpu.dot_dimension_numbers<[1], [0], [0], [1], [0, 0, 1, 1], [], []>} : vector<64x128xf32>, vector<128x8xf32>, vector<64x8xf32> -> vector<64x8xf32>
    %c544 = arith.constant 544 : index
    %c0_9 = arith.constant 0 : index
    %12 = vector.load %arg1[%c544, %c0_9] : memref<1152x128xf32, #tpu.memory_space<vmem>>, vector<64x8xf32>
    %13 = arith.addf %11, %12 : vector<64x8xf32>
    %c352 = arith.constant 352 : index
    %c0_10 = arith.constant 0 : index
    %14 = vector.load %arg1[%c352, %c0_10] : memref<1152x128xf32, #tpu.memory_space<vmem>>, vector<128x8xf32>
    %cst_11 = arith.constant dense<0.000000e+00> : vector<64x8xf32>
    %15 = tpu.matmul %5, %14, %cst_11 {dimension_numbers = #tpu.dot_dimension_numbers<[1], [0], [0], [1], [0, 0, 1, 1], [], []>} : vector<64x128xf32>, vector<128x8xf32>, vector<64x8xf32> -> vector<64x8xf32>
    %c608 = arith.constant 608 : index
    %c0_12 = arith.constant 0 : index
    %16 = vector.load %arg1[%c608, %c0_12] : memref<1152x128xf32, #tpu.memory_space<vmem>>, vector<64x8xf32>
    %17 = arith.addf %15, %16 : vector<64x8xf32>
    %cst_13 = arith.constant dense<0.000000e+00> : vector<64x64xf32>
    %18 = tpu.matmul %9, %13, %cst_13 {dimension_numbers = #tpu.dot_dimension_numbers<[1], [1], [0], [0], [0, 0, 1, 0], [], []>} : vector<64x8xf32>, vector<64x8xf32>, vector<64x64xf32> -> vector<64x64xf32>
    %c736 = arith.constant 736 : index
    %c0_14 = arith.constant 0 : index
    %19 = vector.load %arg1[%c736, %c0_14] : memref<1152x128xf32, #tpu.memory_space<vmem>>, vector<8x72xf32>
    %cst_15 = arith.constant dense<0.000000e+00> : vector<64x72xf32>
    %20 = tpu.matmul %9, %19, %cst_15 {dimension_numbers = #tpu.dot_dimension_numbers<[1], [0], [0], [1], [0, 0, 1, 1], [], []>} : vector<64x8xf32>, vector<8x72xf32>, vector<64x72xf32> -> vector<64x72xf32>
    %c744 = arith.constant 744 : index
    %c0_16 = arith.constant 0 : index
    %21 = vector.load %arg1[%c744, %c0_16] : memref<1152x128xf32, #tpu.memory_space<vmem>>, vector<64x72xf32>
    %22 = arith.mulf %20, %21 : vector<64x72xf32>
    %c808 = arith.constant 808 : index
    %c0_17 = arith.constant 0 : index
    %23 = vector.load %arg1[%c808, %c0_17] : memref<1152x128xf32, #tpu.memory_space<vmem>>, vector<72x64xf32>
    %cst_18 = arith.constant dense<0.000000e+00> : vector<64x64xf32>
    %24 = tpu.matmul %22, %23, %cst_18 {dimension_numbers = #tpu.dot_dimension_numbers<[1], [0], [0], [1], [0, 0, 1, 1], [], []>} : vector<64x72xf32>, vector<72x64xf32>, vector<64x64xf32> -> vector<64x64xf32>
    %25 = arith.addf %18, %24 : vector<64x64xf32>
    %cst_19 = arith.constant 0.353553385 : f32
    %26 = vector.broadcast %cst_19 : f32 to vector<64x64xf32>
    %27 = arith.mulf %25, %26 : vector<64x64xf32>
    %c672 = arith.constant 672 : index
    %c0_20 = arith.constant 0 : index
    %28 = vector.load %arg1[%c672, %c0_20] : memref<1152x128xf32, #tpu.memory_space<vmem>>, vector<64x64xf32>
    %29 = arith.addf %27, %28 : vector<64x64xf32>
    %cst_21 = arith.constant dense<0xFF800000> : vector<64xf32>
    %30 = vector.multi_reduction <maximumf>, %29, %cst_21 [1] : vector<64x64xf32> to vector<64xf32>
    %31 = vector.shape_cast %30 : vector<64xf32> to vector<64x1xf32>
    %32 = vector.broadcast %31 : vector<64x1xf32> to vector<64x64xf32>
    %33 = arith.subf %29, %32 : vector<64x64xf32>
    %34 = math.exp %33 : vector<64x64xf32>
    %cst_22 = arith.constant dense<0.000000e+00> : vector<64xf32>
    %35 = vector.multi_reduction <add>, %34, %cst_22 [1] : vector<64x64xf32> to vector<64xf32>
    %36 = vector.shape_cast %35 : vector<64xf32> to vector<64x1xf32>
    %37 = vector.broadcast %36 : vector<64x1xf32> to vector<64x64xf32>
    %38 = arith.divf %34, %37 : vector<64x64xf32>
    %cst_23 = arith.constant dense<0.000000e+00> : vector<64x8xf32>
    %39 = tpu.matmul %38, %17, %cst_23 {dimension_numbers = #tpu.dot_dimension_numbers<[1], [0], [0], [1], [0, 0, 1, 1], [], []>} : vector<64x64xf32>, vector<64x8xf32>, vector<64x8xf32> -> vector<64x8xf32>
    %c880 = arith.constant 880 : index
    %c0_24 = arith.constant 0 : index
    %40 = vector.load %arg1[%c880, %c0_24] : memref<1152x128xf32, #tpu.memory_space<vmem>>, vector<64x72xf32>
    %cst_25 = arith.constant dense<0.000000e+00> : vector<64x72xf32>
    %41 = tpu.matmul %38, %40, %cst_25 {dimension_numbers = #tpu.dot_dimension_numbers<[1], [0], [0], [1], [0, 0, 1, 1], [], []>} : vector<64x64xf32>, vector<64x72xf32>, vector<64x72xf32> -> vector<64x72xf32>
    %c744_26 = arith.constant 744 : index
    %c0_27 = arith.constant 0 : index
    %42 = vector.load %arg1[%c744_26, %c0_27] : memref<1152x128xf32, #tpu.memory_space<vmem>>, vector<64x72xf32>
    %43 = arith.mulf %41, %42 : vector<64x72xf32>
    %c944 = arith.constant 944 : index
    %c0_28 = arith.constant 0 : index
    %44 = vector.load %arg1[%c944, %c0_28] : memref<1152x128xf32, #tpu.memory_space<vmem>>, vector<72x8xf32>
    %cst_29 = arith.constant dense<0.000000e+00> : vector<64x8xf32>
    %45 = tpu.matmul %43, %44, %cst_29 {dimension_numbers = #tpu.dot_dimension_numbers<[1], [0], [0], [1], [0, 0, 1, 1], [], []>} : vector<64x72xf32>, vector<72x8xf32>, vector<64x8xf32> -> vector<64x8xf32>
    %46 = arith.addf %39, %45 : vector<64x8xf32>
    %c1016 = arith.constant 1016 : index
    %c0_30 = arith.constant 0 : index
    %47 = vector.load %arg1[%c1016, %c0_30] : memref<1152x128xf32, #tpu.memory_space<vmem>>, vector<32x32xf32>
    %c1048 = arith.constant 1048 : index
    %c0_31 = arith.constant 0 : index
    %48 = vector.load %arg1[%c1048, %c0_31] : memref<1152x128xf32, #tpu.memory_space<vmem>>, vector<8x64xf32>
    %49 = vector.extract_strided_slice %48 {offsets = [0, 0], sizes = [1, 32], strides = [1, 1]} : vector<8x64xf32> to vector<1x32xf32>
    %50 = vector.extract_strided_slice %46 {offsets = [0, 0], sizes = [16, 8], strides = [1, 1]} : vector<64x8xf32> to vector<16x8xf32>
    %51 = vector.extract_strided_slice %47 {offsets = [0, 0], sizes = [8, 32], strides = [1, 1]} : vector<32x32xf32> to vector<8x32xf32>
    %cst_32 = arith.constant dense<0.000000e+00> : vector<16x32xf32>
    %52 = tpu.matmul %50, %51, %cst_32 {dimension_numbers = #tpu.dot_dimension_numbers<[1], [0], [0], [1], [0, 0, 1, 1], [], []>} : vector<16x8xf32>, vector<8x32xf32>, vector<16x32xf32> -> vector<16x32xf32>
    %53 = vector.broadcast %49 : vector<1x32xf32> to vector<16x32xf32>
    %54 = arith.addf %53, %52 : vector<16x32xf32>
    %55 = vector.extract_strided_slice %46 {offsets = [16, 0], sizes = [16, 8], strides = [1, 1]} : vector<64x8xf32> to vector<16x8xf32>
    %56 = vector.extract_strided_slice %47 {offsets = [8, 0], sizes = [8, 32], strides = [1, 1]} : vector<32x32xf32> to vector<8x32xf32>
    %cst_33 = arith.constant dense<0.000000e+00> : vector<16x32xf32>
    %57 = tpu.matmul %55, %56, %cst_33 {dimension_numbers = #tpu.dot_dimension_numbers<[1], [0], [0], [1], [0, 0, 1, 1], [], []>} : vector<16x8xf32>, vector<8x32xf32>, vector<16x32xf32> -> vector<16x32xf32>
    %58 = arith.addf %54, %57 : vector<16x32xf32>
    %59 = vector.extract_strided_slice %46 {offsets = [32, 0], sizes = [16, 8], strides = [1, 1]} : vector<64x8xf32> to vector<16x8xf32>
    %60 = vector.extract_strided_slice %47 {offsets = [16, 0], sizes = [8, 32], strides = [1, 1]} : vector<32x32xf32> to vector<8x32xf32>
    %cst_34 = arith.constant dense<0.000000e+00> : vector<16x32xf32>
    %61 = tpu.matmul %59, %60, %cst_34 {dimension_numbers = #tpu.dot_dimension_numbers<[1], [0], [0], [1], [0, 0, 1, 1], [], []>} : vector<16x8xf32>, vector<8x32xf32>, vector<16x32xf32> -> vector<16x32xf32>
    %62 = arith.addf %58, %61 : vector<16x32xf32>
    %63 = vector.extract_strided_slice %46 {offsets = [48, 0], sizes = [16, 8], strides = [1, 1]} : vector<64x8xf32> to vector<16x8xf32>
    %64 = vector.extract_strided_slice %47 {offsets = [24, 0], sizes = [8, 32], strides = [1, 1]} : vector<32x32xf32> to vector<8x32xf32>
    %cst_35 = arith.constant dense<0.000000e+00> : vector<16x32xf32>
    %65 = tpu.matmul %63, %64, %cst_35 {dimension_numbers = #tpu.dot_dimension_numbers<[1], [0], [0], [1], [0, 0, 1, 1], [], []>} : vector<16x8xf32>, vector<8x32xf32>, vector<16x32xf32> -> vector<16x32xf32>
    %66 = arith.addf %62, %65 : vector<16x32xf32>
    %67 = arith.addf %0, %66 : vector<16x32xf32>
    %cst_36 = arith.constant dense<0.000000e+00> : vector<16xf32>
    %68 = vector.multi_reduction <add>, %67, %cst_36 [1] : vector<16x32xf32> to vector<16xf32>
    %69 = vector.shape_cast %68 : vector<16xf32> to vector<16x1xf32>
    %cst_37 = arith.constant 3.200000e+01 : f32
    %70 = vector.broadcast %cst_37 : f32 to vector<16x1xf32>
    %71 = arith.divf %69, %70 : vector<16x1xf32>
    %72 = vector.broadcast %71 : vector<16x1xf32> to vector<16x32xf32>
    %73 = arith.subf %67, %72 : vector<16x32xf32>
    %74 = arith.mulf %73, %73 : vector<16x32xf32>
    %cst_38 = arith.constant dense<0.000000e+00> : vector<16xf32>
    %75 = vector.multi_reduction <add>, %74, %cst_38 [1] : vector<16x32xf32> to vector<16xf32>
    %76 = vector.shape_cast %75 : vector<16xf32> to vector<16x1xf32>
    %cst_39 = arith.constant 3.200000e+01 : f32
    %77 = vector.broadcast %cst_39 : f32 to vector<16x1xf32>
    %78 = arith.divf %76, %77 : vector<16x1xf32>
    %79 = vector.broadcast %71 : vector<16x1xf32> to vector<16x32xf32>
    %80 = arith.subf %67, %79 : vector<16x32xf32>
    %cst_40 = arith.constant 9.99999974E-6 : f32
    %81 = vector.broadcast %cst_40 : f32 to vector<16x1xf32>
    %82 = arith.addf %78, %81 : vector<16x1xf32>
    %83 = math.rsqrt %82 : vector<16x1xf32>
    %84 = vector.broadcast %83 : vector<16x1xf32> to vector<16x32xf32>
    %85 = arith.mulf %80, %84 : vector<16x32xf32>
    %86 = vector.extract_strided_slice %48 {offsets = [2, 0], sizes = [1, 32], strides = [1, 1]} : vector<8x64xf32> to vector<1x32xf32>
    %87 = vector.broadcast %86 : vector<1x32xf32> to vector<16x32xf32>
    %88 = arith.mulf %85, %87 : vector<16x32xf32>
    %89 = vector.extract_strided_slice %48 {offsets = [3, 0], sizes = [1, 32], strides = [1, 1]} : vector<8x64xf32> to vector<1x32xf32>
    %90 = vector.broadcast %89 : vector<1x32xf32> to vector<16x32xf32>
    %91 = arith.addf %88, %90 : vector<16x32xf32>
    %c1056 = arith.constant 1056 : index
    %c0_41 = arith.constant 0 : index
    %92 = vector.load %arg1[%c1056, %c0_41] : memref<1152x128xf32, #tpu.memory_space<vmem>>, vector<32x64xf32>
    %cst_42 = arith.constant dense<0.000000e+00> : vector<16x64xf32>
    %93 = tpu.matmul %91, %92, %cst_42 {dimension_numbers = #tpu.dot_dimension_numbers<[1], [0], [0], [1], [0, 0, 1, 1], [], []>} : vector<16x32xf32>, vector<32x64xf32>, vector<16x64xf32> -> vector<16x64xf32>
    %94 = vector.extract_strided_slice %48 {offsets = [1, 0], sizes = [1, 64], strides = [1, 1]} : vector<8x64xf32> to vector<1x64xf32>
    %95 = vector.broadcast %94 : vector<1x64xf32> to vector<16x64xf32>
    %96 = arith.addf %93, %95 : vector<16x64xf32>
    %cst_43 = arith.constant 0.000000e+00 : f32
    %97 = vector.broadcast %cst_43 : f32 to vector<16x64xf32>
    %98 = arith.maximumf %96, %97 : vector<16x64xf32>
    %c1088 = arith.constant 1088 : index
    %c0_44 = arith.constant 0 : index
    %99 = vector.load %arg1[%c1088, %c0_44] : memref<1152x128xf32, #tpu.memory_space<vmem>>, vector<64x32xf32>
    %cst_45 = arith.constant dense<0.000000e+00> : vector<16x32xf32>
    %100 = tpu.matmul %98, %99, %cst_45 {dimension_numbers = #tpu.dot_dimension_numbers<[1], [0], [0], [1], [0, 0, 1, 1], [], []>} : vector<16x64xf32>, vector<64x32xf32>, vector<16x32xf32> -> vector<16x32xf32>
    %101 = vector.extract_strided_slice %48 {offsets = [4, 0], sizes = [1, 32], strides = [1, 1]} : vector<8x64xf32> to vector<1x32xf32>
    %102 = vector.broadcast %101 : vector<1x32xf32> to vector<16x32xf32>
    %103 = arith.addf %100, %102 : vector<16x32xf32>
    %104 = arith.addf %91, %103 : vector<16x32xf32>
    %cst_46 = arith.constant dense<0.000000e+00> : vector<16xf32>
    %105 = vector.multi_reduction <add>, %104, %cst_46 [1] : vector<16x32xf32> to vector<16xf32>
    %106 = vector.shape_cast %105 : vector<16xf32> to vector<16x1xf32>
    %cst_47 = arith.constant 3.200000e+01 : f32
    %107 = vector.broadcast %cst_47 : f32 to vector<16x1xf32>
    %108 = arith.divf %106, %107 : vector<16x1xf32>
    %109 = vector.broadcast %108 : vector<16x1xf32> to vector<16x32xf32>
    %110 = arith.subf %104, %109 : vector<16x32xf32>
    %111 = arith.mulf %110, %110 : vector<16x32xf32>
    %cst_48 = arith.constant dense<0.000000e+00> : vector<16xf32>
    %112 = vector.multi_reduction <add>, %111, %cst_48 [1] : vector<16x32xf32> to vector<16xf32>
    %113 = vector.shape_cast %112 : vector<16xf32> to vector<16x1xf32>
    %cst_49 = arith.constant 3.200000e+01 : f32
    %114 = vector.broadcast %cst_49 : f32 to vector<16x1xf32>
    %115 = arith.divf %113, %114 : vector<16x1xf32>
    %116 = vector.broadcast %108 : vector<16x1xf32> to vector<16x32xf32>
    %117 = arith.subf %104, %116 : vector<16x32xf32>
    %cst_50 = arith.constant 9.99999974E-6 : f32
    %118 = vector.broadcast %cst_50 : f32 to vector<16x1xf32>
    %119 = arith.addf %115, %118 : vector<16x1xf32>
    %120 = math.rsqrt %119 : vector<16x1xf32>
    %121 = vector.broadcast %120 : vector<16x1xf32> to vector<16x32xf32>
    %122 = arith.mulf %117, %121 : vector<16x32xf32>
    %123 = vector.extract_strided_slice %48 {offsets = [5, 0], sizes = [1, 32], strides = [1, 1]} : vector<8x64xf32> to vector<1x32xf32>
    %124 = vector.broadcast %123 : vector<1x32xf32> to vector<16x32xf32>
    %125 = arith.mulf %122, %124 : vector<16x32xf32>
    %126 = vector.extract_strided_slice %48 {offsets = [6, 0], sizes = [1, 32], strides = [1, 1]} : vector<8x64xf32> to vector<1x32xf32>
    %127 = vector.broadcast %126 : vector<1x32xf32> to vector<16x32xf32>
    %128 = arith.addf %125, %127 : vector<16x32xf32>
    %c0_51 = arith.constant 0 : index
    %c0_52 = arith.constant 0 : index
    %129 = vector.load %arg2[%c0_51, %c0_52] : memref<16x32xf32, #tpu.memory_space<vmem>>, vector<16x32xf32>
    tpu.vector_store %arg2[%c0_51, %c0_52], %128 {strides = array<i32>} : memref<16x32xf32, #tpu.memory_space<vmem>>, vector<16x32xf32>,
    return
  }
}

</mosaic_0001>

<llo_original>
// kernel: forward.1
$region0: #{forward.1}
  #allocation0 [shape = 'u32[]', space=smem, size = 0x4, offset = 0x4, fixed_abs, tag = 'smem constant byte address 0x4 - core index']
  #allocation1 [shape = 'u32[72,128]{1,0:T(1,128)}', space=vmem, size = 0x9000, scoped, tag = 'internal scratch']
  %s0 = inlined_call_operand.hbm [shape: f32[16,32], index: 0, kind: input, shape index: {}]
  %s1 = inlined_call_operand.hbm [shape: f32[1152,128], index: 1, kind: input, shape index: {}]
  %s2 = inlined_call_operand.hbm [shape: f32[16,32], index: 2, kind: output, shape index: {}]
  %s3 = sld [smem:[#allocation0]]
  $region26: #{forward.1} parent=0
    _
  %s5 = ssub.s32 1, %s3
  %s6 = scalar_select 0, %s5, %s3
  $region1: #{forward.1} parent=0
    #allocation2 [shape = 'u8[8192]{0}', space=vmem, size = 0x2000, scoped, tag = 'input window, operand 0, single buffered']
    #allocation3 [shape = 's32[1]{0}', space=sflag, size = 0x4, scoped, tag = 'scoped memory for forward.1']
    #allocation4 [shape = 's32[1]{0}', space=sflag, size = 0x4, scoped, tag = 'scoped memory for forward.1']
    #allocation5 [shape = 'u8[589824]{0}', space=vmem, size = 0x90000, scoped, tag = 'input window, operand 1, single buffered']
    #allocation6 [shape = 's32[1]{0}', space=sflag, size = 0x4, scoped, tag = 'scoped memory for forward.1']
    #allocation7 [shape = 'u8[8192]{0}', space=vmem, size = 0x2000, scoped, tag = 'output window, operand 0, single buffered']
    %7 = vsyncpa [#allocation3], 0
    %8 = vsyncpa [#allocation6], 0
    %9 = vsyncpa [#allocation4], 0
    // Predicated region
    $region2: #{forward.1} parent=1 // pred_check
      _
    $region3: #{forward.1} parent=1 // pred_check_branch
      %11 = sbr.rel (0) target = $region5
    $region4: #{forward.1} parent=1 // pred_region
      %13 = vsyncadd [#allocation3], 0
      %s14 = sshll.u32 %s0, 4
      %s15 = int_to_ptr.hbm [resolvable:$true] %s14
      %s16 = sshll.u32 [#allocation2], 4
      %s17 = int_to_ptr.vmem [resolvable:$true] %s16
      %22 = dma.hbm_to_vmem [thread:$0]  %s15, 256, %s17, [#allocation3], 128, 128, 8
    $region5: #{forward.1} parent=1 // pred_fallthru
      _
    // Predicated region
    $region6: #{forward.1} parent=1 // pred_check
      _
    $region7: #{forward.1} parent=1 // pred_check_branch
      %24 = sbr.rel (0) target = $region9
    $region8: #{forward.1} parent=1 // pred_region
      %26 = vsyncadd [#allocation6], 0
      %s27 = sshll.u32 %s1, 4
      %s28 = int_to_ptr.hbm [resolvable:$true] %s27
      %s29 = sshll.u32 [#allocation5], 4
      %s30 = int_to_ptr.vmem [resolvable:$true] %s29
      %35 = dma.hbm_to_vmem [thread:$0]  %s28, 18432, %s30, [#allocation6], 128, 128, 8
    $region9: #{forward.1} parent=1 // pred_fallthru
      _
    // Predicated region
    $region10: #{forward.1} parent=1 // pred_check
      _
    $region11: #{forward.1} parent=1 // pred_check_branch
      %37 = sbr.rel (0) target = $region13
    $region12: #{forward.1} parent=1 // pred_region
      %39 = dma.done [#allocation3], 256
    $region13: #{forward.1} parent=1 // pred_fallthru
      _
    // Predicated region
    $region14: #{forward.1} parent=1 // pred_check
      _
    $region15: #{forward.1} parent=1 // pred_check_branch
      %41 = sbr.rel (0) target = $region17
    $region16: #{forward.1} parent=1 // pred_region
      %43 = dma.done [#allocation6], 18432
    $region17: #{forward.1} parent=1 // pred_fallthru
      _
    %v44 = vld [vmem:[#allocation2] sm:$0xff]
    %v45 = vld [vmem:[#allocation2 + $0x8] sm:$0xff]
    %v46 = vld [vmem:[#allocation5] sm:$0xff]
    %v47 = vld [vmem:[#allocation5 + $0x8] sm:$0xff]
    %v48 = vld [vmem:[#allocation5 + $0x10] sm:$0xff]
    %v49 = vld [vmem:[#allocation5 + $0x18] sm:$0xff]
    %vm50 = vcmask 261120
    %v52 = vsel %vm50, %v44, 0
    %v55 = vsel %vm50, %v45, 0
    %57 = vmatpush.msra.mxu0 0.0
    %58 = vmatpush.msra.mxu0 0.0
    %59 = vmatpush.msra.mxu0 0.0
    %60 = vmatpush.msra.mxu0 0.0
    %61 = vmatpush.msra.mxu0 0.0
    %62 = vmatpush.msra.mxu0 0.0
    %63 = vmatpush.msra.mxu0 0.0
    %64 = vmatpush.msra.mxu0 0.0
    %65 = vmatpush.msra.mxu0 0.0
    %66 = vmatpush.msra.mxu0 0.0
    %67 = vmatpush.msra.mxu0 0.0
    %68 = vmatpush.msra.mxu0 0.0
    %69 = vmatpush.msra.mxu0 %v49
    %70 = vmatpush.msra.mxu0 %v48
    %71 = vmatpush.msra.mxu0 %v47
    %72 = vmatpush.msra.mxu0 %v46
    %73 = vmatmul.f32.gmra.mxu0 %v52
    %v74 = vpop.f32.mrf.mxu0
    %v75 = vadd.f32 0.0, %v74
    %76 = vmatmul.f32.gmra.mxu0 %v55
    %v77 = vpop.f32.mrf.mxu0
    %v78 = vadd.f32 0.0, %v77
    %79 = vdwg.mxu0
    %v80 = vld [vmem:[#allocation5 + $0x20] sm:$0xff]
    %v81 = vld [vmem:[#allocation5 + $0x28] sm:$0xff]
    %v82 = vld [vmem:[#allocation5 + $0x30] sm:$0xff]
    %v83 = vld [vmem:[#allocation5 + $0x38] sm:$0xff]
    %v84 = vld [vmem:[#allocation5 + $0x40] sm:$0xff]
    %v85 = vld [vmem:[#allocation5 + $0x48] sm:$0xff]
    %v86 = vld [vmem:[#allocation5 + $0x50] sm:$0xff]
    %v87 = vld [vmem:[#allocation5 + $0x58] sm:$0xff]
    %v88 = vmul.f32 %v75, %v80
    %v89 = vmul.f32 %v78, %v81
    %v90 = vmul.f32 %v75, %v82
    %v91 = vmul.f32 %v78, %v83
    %v92 = vmul.f32 %v75, %v84
    %v93 = vmul.f32 %v78, %v85
    %v94 = vmul.f32 %v75, %v86
    %v95 = vmul.f32 %v78, %v87
    %v96 = vld [vmem:[#allocation5 + $0x60] sm:$0xff]
    %v97 = vld [vmem:[#allocation5 + $0x68] sm:$0xff]
    %v98 = vld [vmem:[#allocation5 + $0x70] sm:$0xff]
    %v99 = vld [vmem:[#allocation5 + $0x78] sm:$0xff]
    %v100 = vld [vmem:[#allocation5 + $0x80] sm:$0xff]
    %v101 = vld [vmem:[#allocation5 + $0x88] sm:$0xff]
    %v102 = vld [vmem:[#allocation5 + $0x90] sm:$0xff]
    %v103 = vld [vmem:[#allocation5 + $0x98] sm:$0xff]
    %v104 = vld [vmem:[#allocation5 + $0xa0] sm:$0xff]
    %v105 = vld [vmem:[#allocation5 + $0xa8] sm:$0xff]
    %v106 = vld [vmem:[#allocation5 + $0xb0] sm:$0xff]
    %v107 = vld [vmem:[#allocation5 + $0xb8] sm:$0xff]
    %v108 = vld [vmem:[#allocation5 + $0xc0] sm:$0xff]
    %v109 = vld [vmem:[#allocation5 + $0xc8] sm:$0xff]
    %v110 = vld [vmem:[#allocation5 + $0xd0] sm:$0xff]
    %v111 = vld [vmem:[#allocation5 + $0xd8] sm:$0xff]
    %v112 = vld [vmem:[#allocation5 + $0x1e0] sm:$0xff]
    %v113 = vld [vmem:[#allocation5 + $0x1e8] sm:$0xff]
    %v114 = vld [vmem:[#allocation5 + $0x1f0] sm:$0xff]
    %v115 = vld [vmem:[#allocation5 + $0x1f8] sm:$0xff]
    %v116 = vld [vmem:[#allocation5 + $0x200] sm:$0xff]
    %v117 = vld [vmem:[#allocation5 + $0x208] sm:$0xff]
    %v118 = vld [vmem:[#allocation5 + $0x210] sm:$0xff]
    %v119 = vld [vmem:[#allocation5 + $0x218] sm:$0xff]
    %120 = vmatpush.msra.mxu0 %v111
    %121 = vmatpush.msra.mxu0 %v110
    %122 = vmatpush.msra.mxu0 %v109
    %123 = vmatpush.msra.mxu0 %v108
    %124 = vmatpush.msra.mxu0 %v107
    %125 = vmatpush.msra.mxu0 %v106
    %126 = vmatpush.msra.mxu0 %v105
    %127 = vmatpush.msra.mxu0 %v104
    %128 = vmatpush.msra.mxu0 %v103
    %129 = vmatpush.msra.mxu0 %v102
    %130 = vmatpush.msra.mxu0 %v101
    %131 = vmatpush.msra.mxu0 %v100
    %132 = vmatpush.msra.mxu0 %v99
    %133 = vmatpush.msra.mxu0 %v98
    %134 = vmatpush.msra.mxu0 %v97
    %135 = vmatpush.msra.mxu0 %v96
    %136 = vmatmul.f32.gmra.mxu0 %v88
    %v137 = vpop.f32.mrf.mxu0
    %v138 = vadd.f32 %v112, %v137
    %139 = vmatmul.f32.gmra.mxu0 %v89
    %v140 = vpop.f32.mrf.mxu0
    %v141 = vadd.f32 %v113, %v140
    %142 = vmatmul.f32.gmra.mxu0 %v90
    %v143 = vpop.f32.mrf.mxu0
    %v144 = vadd.f32 %v114, %v143
    %145 = vmatmul.f32.gmra.mxu0 %v91
    %v146 = vpop.f32.mrf.mxu0
    %v147 = vadd.f32 %v115, %v146
    %148 = vmatmul.f32.gmra.mxu0 %v92
    %v149 = vpop.f32.mrf.mxu0
    %v150 = vadd.f32 %v116, %v149
    %151 = vmatmul.f32.gmra.mxu0 %v93
    %v152 = vpop.f32.mrf.mxu0
    %v153 = vadd.f32 %v117, %v152
    %154 = vmatmul.f32.gmra.mxu0 %v94
    %v155 = vpop.f32.mrf.mxu0
    %v156 = vadd.f32 %v118, %v155
    %157 = vmatmul.f32.gmra.mxu0 %v95
    %v158 = vpop.f32.mrf.mxu0
    %v159 = vadd.f32 %v119, %v158
    %160 = vdwg.mxu0
    %v161 = vld [vmem:[#allocation5 + $0xe0] sm:$0xff]
    %v162 = vld [vmem:[#allocation5 + $0xe8] sm:$0xff]
    %v163 = vld [vmem:[#allocation5 + $0xf0] sm:$0xff]
    %v164 = vld [vmem:[#allocation5 + $0xf8] sm:$0xff]
    %v165 = vld [vmem:[#allocation5 + $0x100] sm:$0xff]
    %v166 = vld [vmem:[#allocation5 + $0x108] sm:$0xff]
    %v167 = vld [vmem:[#allocation5 + $0x110] sm:$0xff]
    %v168 = vld [vmem:[#allocation5 + $0x118] sm:$0xff]
    %v169 = vld [vmem:[#allocation5 + $0x120] sm:$0xff]
    %v170 = vld [vmem:[#allocation5 + $0x128] sm:$0xff]
    %v171 = vld [vmem:[#allocation5 + $0x130] sm:$0xff]
    %v172 = vld [vmem:[#allocation5 + $0x138] sm:$0xff]
    %v173 = vld [vmem:[#allocation5 + $0x140] sm:$0xff]
    %v174 = vld [vmem:[#allocation5 + $0x148] sm:$0xff]
    %v175 = vld [vmem:[#allocation5 + $0x150] sm:$0xff]
    %v176 = vld [vmem:[#allocation5 + $0x158] sm:$0xff]
    %v177 = vld [vmem:[#allocation5 + $0x220] sm:$0xff]
    %v178 = vld [vmem:[#allocation5 + $0x228] sm:$0xff]
    %v179 = vld [vmem:[#allocation5 + $0x230] sm:$0xff]
    %v180 = vld [vmem:[#allocation5 + $0x238] sm:$0xff]
    %v181 = vld [vmem:[#allocation5 + $0x240] sm:$0xff]
    %v182 = vld [vmem:[#allocation5 + $0x248] sm:$0xff]
    %v183 = vld [vmem:[#allocation5 + $0x250] sm:$0xff]
    %v184 = vld [vmem:[#allocation5 + $0x258] sm:$0xff]
    %185 = vmatpush.msra.mxu0 %v176
    %186 = vmatpush.msra.mxu0 %v175
    %187 = vmatpush.msra.mxu0 %v174
    %188 = vmatpush.msra.mxu0 %v173
    %189 = vmatpush.msra.mxu0 %v172
    %190 = vmatpush.msra.mxu0 %v171
    %191 = vmatpush.msra.mxu0 %v170
    %192 = vmatpush.msra.mxu0 %v169
    %193 = vmatpush.msra.mxu0 %v168
    %194 = vmatpush.msra.mxu0 %v167
    %195 = vmatpush.msra.mxu0 %v166
    %196 = vmatpush.msra.mxu0 %v165
    %197 = vmatpush.msra.mxu0 %v164
    %198 = vmatpush.msra.mxu0 %v163
    %199 = vmatpush.msra.mxu0 %v162
    %200 = vmatpush.msra.mxu0 %v161
    %201 = vmatmul.f32.gmra.mxu0 %v88
    %v202 = vpop.f32.mrf.mxu0
    %v203 = vadd.f32 %v177, %v202
    %204 = vmatmul.f32.gmra.mxu0 %v89
    %v205 = vpop.f32.mrf.mxu0
    %v206 = vadd.f32 %v178, %v205
    %207 = vmatmul.f32.gmra.mxu0 %v90
    %v208 = vpop.f32.mrf.mxu0
    %v209 = vadd.f32 %v179, %v208
    %210 = vmatmul.f32.gmra.mxu0 %v91
    %v211 = vpop.f32.mrf.mxu0
    %v212 = vadd.f32 %v180, %v211
    %213 = vmatmul.f32.gmra.mxu0 %v92
    %v214 = vpop.f32.mrf.mxu0
    %v215 = vadd.f32 %v181, %v214
    %216 = vmatmul.f32.gmra.mxu0 %v93
    %v217 = vpop.f32.mrf.mxu0
    %v218 = vadd.f32 %v182, %v217
    %219 = vmatmul.f32.gmra.mxu0 %v94
    %v220 = vpop.f32.mrf.mxu0
    %v221 = vadd.f32 %v183, %v220
    %222 = vmatmul.f32.gmra.mxu0 %v95
    %v223 = vpop.f32.mrf.mxu0
    %v224 = vadd.f32 %v184, %v223
    %225 = vdwg.mxu0
    %v226 = vld [vmem:[#allocation5 + $0x160] sm:$0xff]
    %v227 = vld [vmem:[#allocation5 + $0x168] sm:$0xff]
    %v228 = vld [vmem:[#allocation5 + $0x170] sm:$0xff]
    %v229 = vld [vmem:[#allocation5 + $0x178] sm:$0xff]
    %v230 = vld [vmem:[#allocation5 + $0x180] sm:$0xff]
    %v231 = vld [vmem:[#allocation5 + $0x188] sm:$0xff]
    %v232 = vld [vmem:[#allocation5 + $0x190] sm:$0xff]
    %v233 = vld [vmem:[#allocation5 + $0x198] sm:$0xff]
    %v234 = vld [vmem:[#allocation5 + $0x1a0] sm:$0xff]
    %v235 = vld [vmem:[#allocation5 + $0x1a8] sm:$0xff]
    %v236 = vld [vmem:[#allocation5 + $0x1b0] sm:$0xff]
    %v237 = vld [vmem:[#allocation5 + $0x1b8] sm:$0xff]
    %v238 = vld [vmem:[#allocation5 + $0x1c0] sm:$0xff]
    %v239 = vld [vmem:[#allocation5 + $0x1c8] sm:$0xff]
    %v240 = vld [vmem:[#allocation5 + $0x1d0] sm:$0xff]
    %v241 = vld [vmem:[#allocation5 + $0x1d8] sm:$0xff]
    %v242 = vld [vmem:[#allocation5 + $0x260] sm:$0xff]
    %v243 = vld [vmem:[#allocation5 + $0x268] sm:$0xff]
    %v244 = vld [vmem:[#allocation5 + $0x270] sm:$0xff]
    %v245 = vld [vmem:[#allocation5 + $0x278] sm:$0xff]
    %v246 = vld [vmem:[#allocation5 + $0x280] sm:$0xff]
    %v247 = vld [vmem:[#allocation5 + $0x288] sm:$0xff]
    %v248 = vld [vmem:[#allocation5 + $0x290] sm:$0xff]
    %v249 = vld [vmem:[#allocation5 + $0x298] sm:$0xff]
    %250 = vmatpush.msra.mxu0 %v241
    %251 = vmatpush.msra.mxu0 %v240
    %252 = vmatpush.msra.mxu0 %v239
    %253 = vmatpush.msra.mxu0 %v238
    %254 = vmatpush.msra.mxu0 %v237
    %255 = vmatpush.msra.mxu0 %v236
    %256 = vmatpush.msra.mxu0 %v235
    %257 = vmatpush.msra.mxu0 %v234
    %258 = vmatpush.msra.mxu0 %v233
    %259 = vmatpush.msra.mxu0 %v232
    %260 = vmatpush.msra.mxu0 %v231
    %261 = vmatpush.msra.mxu0 %v230
    %262 = vmatpush.msra.mxu0 %v229
    %263 = vmatpush.msra.mxu0 %v228
    %264 = vmatpush.msra.mxu0 %v227
    %265 = vmatpush.msra.mxu0 %v226
    %266 = vmatmul.f32.gmra.mxu0 %v88
    %v267 = vpop.f32.mrf.mxu0
    %v268 = vadd.f32 %v242, %v267
    %269 = vmatmul.f32.gmra.mxu0 %v89
    %v270 = vpop.f32.mrf.mxu0
    %v271 = vadd.f32 %v243, %v270
    %272 = vmatmul.f32.gmra.mxu0 %v90
    %v273 = vpop.f32.mrf.mxu0
    %v274 = vadd.f32 %v244, %v273
    %275 = vmatmul.f32.gmra.mxu0 %v91
    %v276 = vpop.f32.mrf.mxu0
    %v277 = vadd.f32 %v245, %v276
    %278 = vmatmul.f32.gmra.mxu0 %v92
    %v279 = vpop.f32.mrf.mxu0
    %v280 = vadd.f32 %v246, %v279
    %281 = vmatmul.f32.gmra.mxu0 %v93
    %v282 = vpop.f32.mrf.mxu0
    %v283 = vadd.f32 %v247, %v282
    %284 = vmatmul.f32.gmra.mxu0 %v94
    %v285 = vpop.f32.mrf.mxu0
    %v286 = vadd.f32 %v248, %v285
    %287 = vmatmul.f32.gmra.mxu0 %v95
    %v288 = vpop.f32.mrf.mxu0
    %v289 = vadd.f32 %v249, %v288
    %290 = vdwg.mxu0
    %v291 = vld [vmem:[#allocation5 + $0x2e0] sm:$0xff]
    %vm292 = vcmask 64512
    %v294 = vsel %vm292, %v138, 0
    %v297 = vsel %vm292, %v141, 0
    %v300 = vsel %vm292, %v144, 0
    %v303 = vsel %vm292, %v147, 0
    %v306 = vsel %vm292, %v150, 0
    %v309 = vsel %vm292, %v153, 0
    %v312 = vsel %vm292, %v156, 0
    %v315 = vsel %vm292, %v159, 0
    %317 = vmatpush.msra.mxu0 0.0
    %318 = vmatpush.msra.mxu0 0.0
    %319 = vmatpush.msra.mxu0 0.0
    %320 = vmatpush.msra.mxu0 0.0
    %321 = vmatpush.msra.mxu0 0.0
    %322 = vmatpush.msra.mxu0 0.0
    %323 = vmatpush.msra.mxu0 0.0
    %324 = vmatpush.msra.mxu0 0.0
    %325 = vmatpush.msra.mxu0 0.0
    %326 = vmatpush.msra.mxu0 0.0
    %327 = vmatpush.msra.mxu0 0.0
    %328 = vmatpush.msra.mxu0 0.0
    %329 = vmatpush.msra.mxu0 0.0
    %330 = vmatpush.msra.mxu0 0.0
    %331 = vmatpush.msra.mxu0 0.0
    %332 = vmatpush.msra.mxu0 %v291
    %333 = vmatmul.f32.gmra.mxu0 %v294
    %v334 = vpop.f32.mrf.mxu0
    %v335 = vadd.f32 0.0, %v334
    %336 = vmatmul.f32.gmra.mxu0 %v297
    %v337 = vpop.f32.mrf.mxu0
    %v338 = vadd.f32 0.0, %v337
    %339 = vmatmul.f32.gmra.mxu0 %v300
    %v340 = vpop.f32.mrf.mxu0
    %v341 = vadd.f32 0.0, %v340
    %342 = vmatmul.f32.gmra.mxu0 %v303
    %v343 = vpop.f32.mrf.mxu0
    %v344 = vadd.f32 0.0, %v343
    %345 = vmatmul.f32.gmra.mxu0 %v306
    %v346 = vpop.f32.mrf.mxu0
    %v347 = vadd.f32 0.0, %v346
    %348 = vmatmul.f32.gmra.mxu0 %v309
    %v349 = vpop.f32.mrf.mxu0
    %v350 = vadd.f32 0.0, %v349
    %351 = vmatmul.f32.gmra.mxu0 %v312
    %v352 = vpop.f32.mrf.mxu0
    %v353 = vadd.f32 0.0, %v352
    %354 = vmatmul.f32.gmra.mxu0 %v315
    %v355 = vpop.f32.mrf.mxu0
    %v356 = vadd.f32 0.0, %v355
    %357 = vdwg.mxu0
    %v358 = vld [vmem:[#allocation5 + $0x2e8] sm:$0xff]
    %v359 = vld [vmem:[#allocation5 + $0x2f0] sm:$0xff]
    %v360 = vld [vmem:[#allocation5 + $0x2f8] sm:$0xff]
    %v361 = vld [vmem:[#allocation5 + $0x300] sm:$0xff]
    %v362 = vld [vmem:[#allocation5 + $0x308] sm:$0xff]
    %v363 = vld [vmem:[#allocation5 + $0x310] sm:$0xff]
    %v364 = vld [vmem:[#allocation5 + $0x318] sm:$0xff]
    %v365 = vld [vmem:[#allocation5 + $0x320] sm:$0xff]
    %v366 = vmul.f32 %v335, %v358
    %v367 = vmul.f32 %v338, %v359
    %v368 = vmul.f32 %v341, %v360
    %v369 = vmul.f32 %v344, %v361
    %v370 = vmul.f32 %v347, %v362
    %v371 = vmul.f32 %v350, %v363
    %v372 = vmul.f32 %v353, %v364
    %v373 = vmul.f32 %v356, %v365
    %v374 = vld [vmem:[#allocation5 + $0x328] sm:$0xff]
    %v375 = vld [vmem:[#allocation5 + $0x330] sm:$0xff]
    %v376 = vld [vmem:[#allocation5 + $0x338] sm:$0xff]
    %v377 = vld [vmem:[#allocation5 + $0x340] sm:$0xff]
    %v378 = vld [vmem:[#allocation5 + $0x348] sm:$0xff]
    %v379 = vld [vmem:[#allocation5 + $0x350] sm:$0xff]
    %v380 = vld [vmem:[#allocation5 + $0x358] sm:$0xff]
    %v381 = vld [vmem:[#allocation5 + $0x360] sm:$0xff]
    %v382 = vld [vmem:[#allocation5 + $0x368] sm:$0xff]
    %vm383 = vcmask 588800
    %v385 = vsel %vm383, %v366, 0
    %v388 = vsel %vm383, %v367, 0
    %v391 = vsel %vm383, %v368, 0
    %v394 = vsel %vm383, %v369, 0
    %v397 = vsel %vm383, %v370, 0
    %v400 = vsel %vm383, %v371, 0
    %v403 = vsel %vm383, %v372, 0
    %v406 = vsel %vm383, %v373, 0
    %408 = vmatpush.msra.mxu0 0.0
    %409 = vmatpush.msra.mxu0 0.0
    %410 = vmatpush.msra.mxu0 0.0
    %411 = vmatpush.msra.mxu0 0.0
    %412 = vmatpush.msra.mxu0 0.0
    %413 = vmatpush.msra.mxu0 0.0
    %414 = vmatpush.msra.mxu0 0.0
    %415 = vmatpush.msra.mxu0 %v382
    %416 = vmatpush.msra.mxu0 %v381
    %417 = vmatpush.msra.mxu0 %v380
    %418 = vmatpush.msra.mxu0 %v379
    %419 = vmatpush.msra.mxu0 %v378
    %420 = vmatpush.msra.mxu0 %v377
    %421 = vmatpush.msra.mxu0 %v376
    %422 = vmatpush.msra.mxu0 %v375
    %423 = vmatpush.msra.mxu0 %v374
    %424 = vmatmul.f32.gmra.mxu0 %v385
    %v425 = vpop.f32.mrf.mxu0
    %v426 = vadd.f32 0.0, %v425
    %427 = vmatmul.f32.gmra.mxu0 %v388
    %v428 = vpop.f32.mrf.mxu0
    %v429 = vadd.f32 0.0, %v428
    %430 = vmatmul.f32.gmra.mxu0 %v391
    %v431 = vpop.f32.mrf.mxu0
    %v432 = vadd.f32 0.0, %v431
    %433 = vmatmul.f32.gmra.mxu0 %v394
    %v434 = vpop.f32.mrf.mxu0
    %v435 = vadd.f32 0.0, %v434
    %436 = vmatmul.f32.gmra.mxu0 %v397
    %v437 = vpop.f32.mrf.mxu0
    %v438 = vadd.f32 0.0, %v437
    %439 = vmatmul.f32.gmra.mxu0 %v400
    %v440 = vpop.f32.mrf.mxu0
    %v441 = vadd.f32 0.0, %v440
    %442 = vmatmul.f32.gmra.mxu0 %v403
    %v443 = vpop.f32.mrf.mxu0
    %v444 = vadd.f32 0.0, %v443
    %445 = vmatmul.f32.gmra.mxu0 %v406
    %v446 = vpop.f32.mrf.mxu0
    %v447 = vadd.f32 0.0, %v446
    %448 = vdwg.mxu0
    %v450 = vsel %vm292, %v203, 0
    %v453 = vsel %vm292, %v206, 0
    %v456 = vsel %vm292, %v209, 0
    %v459 = vsel %vm292, %v212, 0
    %v462 = vsel %vm292, %v215, 0
    %v465 = vsel %vm292, %v218, 0
    %v468 = vsel %vm292, %v221, 0
    %v471 = vsel %vm292, %v224, 0
    %473 = vmatpush.xpose.msra.mxu0 0.0
    %474 = vmatpush.xpose.msra.mxu0 0.0
    %475 = vmatpush.xpose.msra.mxu0 0.0
    %476 = vmatpush.xpose.msra.mxu0 0.0
    %477 = vmatpush.xpose.msra.mxu0 0.0
    %478 = vmatpush.xpose.msra.mxu0 0.0
    %479 = vmatpush.xpose.msra.mxu0 0.0
    %480 = vmatpush.xpose.msra.mxu0 0.0
    %481 = vmatpush.xpose.msra.mxu0 %v471
    %482 = vmatpush.xpose.msra.mxu0 %v468
    %483 = vmatpush.xpose.msra.mxu0 %v465
    %484 = vmatpush.xpose.msra.mxu0 %v462
    %485 = vmatpush.xpose.msra.mxu0 %v459
    %486 = vmatpush.xpose.msra.mxu0 %v456
    %487 = vmatpush.xpose.msra.mxu0 %v453
    %488 = vmatpush.xpose.msra.mxu0 %v450
    %489 = vmatmul.f32.gmra.mxu0 %v294
    %v490 = vpop.f32.mrf.mxu0
    %v491 = vadd.f32 %v426, %v490
    %492 = vmatmul.f32.gmra.mxu0 %v297
    %v493 = vpop.f32.mrf.mxu0
    %v494 = vadd.f32 %v429, %v493
    %495 = vmatmul.f32.gmra.mxu0 %v300
    %v496 = vpop.f32.mrf.mxu0
    %v497 = vadd.f32 %v432, %v496
    %498 = vmatmul.f32.gmra.mxu0 %v303
    %v499 = vpop.f32.mrf.mxu0
    %v500 = vadd.f32 %v435, %v499
    %501 = vmatmul.f32.gmra.mxu0 %v306
    %v502 = vpop.f32.mrf.mxu0
    %v503 = vadd.f32 %v438, %v502
    %504 = vmatmul.f32.gmra.mxu0 %v309
    %v505 = vpop.f32.mrf.mxu0
    %v506 = vadd.f32 %v441, %v505
    %507 = vmatmul.f32.gmra.mxu0 %v312
    %v508 = vpop.f32.mrf.mxu0
    %v509 = vadd.f32 %v444, %v508
    %510 = vmatmul.f32.gmra.mxu0 %v315
    %v511 = vpop.f32.mrf.mxu0
    %v512 = vadd.f32 %v447, %v511
    %513 = vdwg.mxu0
    %v514 = vmul.f32 %v491, 0.35355338
    %v515 = vmul.f32 %v494, 0.35355338
    %v516 = vmul.f32 %v497, 0.35355338
    %v517 = vmul.f32 %v500, 0.35355338
    %v518 = vmul.f32 %v503, 0.35355338
    %v519 = vmul.f32 %v506, 0.35355338
    %v520 = vmul.f32 %v509, 0.35355338
    %v521 = vmul.f32 %v512, 0.35355338
    %v522 = vld [vmem:[#allocation5 + $0x2a0] sm:$0xff]
    %v523 = vld [vmem:[#allocation5 + $0x2a8] sm:$0xff]
    %v524 = vld [vmem:[#allocation5 + $0x2b0] sm:$0xff]
    %v525 = vld [vmem:[#allocation5 + $0x2b8] sm:$0xff]
    %v526 = vld [vmem:[#allocation5 + $0x2c0] sm:$0xff]
    %v527 = vld [vmem:[#allocation5 + $0x2c8] sm:$0xff]
    %v528 = vld [vmem:[#allocation5 + $0x2d0] sm:$0xff]
    %v529 = vld [vmem:[#allocation5 + $0x2d8] sm:$0xff]
    %v530 = vadd.f32 %v514, %v522
    %v531 = vadd.f32 %v515, %v523
    %v532 = vadd.f32 %v516, %v524
    %v533 = vadd.f32 %v517, %v525
    %v534 = vadd.f32 %v518, %v526
    %v535 = vadd.f32 %v519, %v527
    %v536 = vadd.f32 %v520, %v528
    %v537 = vadd.f32 %v521, %v529
    %vm538 = vcmask 523264
    %v539 = vsel %vm538, %v530, -inf
    %540 = vmax.xlane.f32.xlu0 %v539
    %v541 = vpop.xlane.xlu0 %540
    %v542 = vsel %vm538, %v531, -inf
    %543 = vmax.xlane.f32.xlu0 %v542
    %v544 = vpop.xlane.xlu0 %543
    %v545 = vsel %vm538, %v532, -inf
    %546 = vmax.xlane.f32.xlu0 %v545
    %v547 = vpop.xlane.xlu0 %546
    %v548 = vsel %vm538, %v533, -inf
    %549 = vmax.xlane.f32.xlu0 %v548
    %v550 = vpop.xlane.xlu0 %549
    %v551 = vsel %vm538, %v534, -inf
    %552 = vmax.xlane.f32.xlu0 %v551
    %v553 = vpop.xlane.xlu0 %552
    %v554 = vsel %vm538, %v535, -inf
    %555 = vmax.xlane.f32.xlu0 %v554
    %v556 = vpop.xlane.xlu0 %555
    %v557 = vsel %vm538, %v536, -inf
    %558 = vmax.xlane.f32.xlu0 %v557
    %v559 = vpop.xlane.xlu0 %558
    %v560 = vsel %vm538, %v537, -inf
    %561 = vmax.xlane.f32.xlu0 %v560
    %v562 = vpop.xlane.xlu0 %561
    %v563 = vsub.f32 %v530, %v541
    %v564 = vsub.f32 %v531, %v544
    %v565 = vsub.f32 %v532, %v547
    %v566 = vsub.f32 %v533, %v550
    %v567 = vsub.f32 %v534, %v553
    %v568 = vsub.f32 %v535, %v556
    %v569 = vsub.f32 %v536, %v559
    %v570 = vsub.f32 %v537, %v562
    %v571 = vmul.f32 %v563, 1.442695
    %v572 = vpow.pop %v571
    %v573 = vmul.f32 %v564, 1.442695
    %v574 = vpow.pop %v573
    %v575 = vmul.f32 %v565, 1.442695
    %v576 = vpow.pop %v575
    %v577 = vmul.f32 %v566, 1.442695
    %v578 = vpow.pop %v577
    %v579 = vmul.f32 %v567, 1.442695
    %v580 = vpow.pop %v579
    %v581 = vmul.f32 %v568, 1.442695
    %v582 = vpow.pop %v581
    %v583 = vmul.f32 %v569, 1.442695
    %v584 = vpow.pop %v583
    %v585 = vmul.f32 %v570, 1.442695
    %v586 = vpow.pop %v585
    %v587 = vsel %vm538, %v572, 0.0
    %588 = vadd.xlane.f32.xlu0 %v587
    %v589 = vpop.xlane.xlu0 %588
    %v590 = vsel %vm538, %v574, 0.0
    %591 = vadd.xlane.f32.xlu0 %v590
    %v592 = vpop.xlane.xlu0 %591
    %v593 = vsel %vm538, %v576, 0.0
    %594 = vadd.xlane.f32.xlu0 %v593
    %v595 = vpop.xlane.xlu0 %594
    %v596 = vsel %vm538, %v578, 0.0
    %597 = vadd.xlane.f32.xlu0 %v596
    %v598 = vpop.xlane.xlu0 %597
    %v599 = vsel %vm538, %v580, 0.0
    %600 = vadd.xlane.f32.xlu0 %v599
    %v601 = vpop.xlane.xlu0 %600
    %v602 = vsel %vm538, %v582, 0.0
    %603 = vadd.xlane.f32.xlu0 %v602
    %v604 = vpop.xlane.xlu0 %603
    %v605 = vsel %vm538, %v584, 0.0
    %606 = vadd.xlane.f32.xlu0 %v605
    %v607 = vpop.xlane.xlu0 %606
    %v608 = vsel %vm538, %v586, 0.0
    %609 = vadd.xlane.f32.xlu0 %v608
    %v610 = vpop.xlane.xlu0 %609
    %v611 = vrcp.pop %v589
    %v612 = vmul.f32 %v589, %v611
    %v613 = vsub.f32 1.0, %v612
    %v614 = vmul.f32 %v611, %v613
    %v615 = vadd.f32 %v611, %v614
    %vm616 = vweird.f32 %v589
    %vm617 = vweird.f32 %v611
    %vm618 = vmor %vm616, %vm617
    %v619 = vsel %vm618, %v611, %v615
    %v620 = vand.u32 2147483647, %v589
    %vm621 = vcmp.eq.f32.partialorder %v620, 8.507059e+37
    %v622 = vand.u32 %v589, 2147483648
    %v623 = vor.u32 1.1754944e-38, %v622
    %v624 = vsel %vm621, %v623, %v619
    %v625 = vmul.f32 %v572, %v624
    %v626 = vrcp.pop %v592
    %v627 = vmul.f32 %v592, %v626
    %v628 = vsub.f32 1.0, %v627
    %v629 = vmul.f32 %v626, %v628
    %v630 = vadd.f32 %v626, %v629
    %vm631 = vweird.f32 %v592
    %vm632 = vweird.f32 %v626
    %vm633 = vmor %vm631, %vm632
    %v634 = vsel %vm633, %v626, %v630
    %v635 = vand.u32 2147483647, %v592
    %vm636 = vcmp.eq.f32.partialorder %v635, 8.507059e+37
    %v637 = vand.u32 %v592, 2147483648
    %v638 = vor.u32 1.1754944e-38, %v637
    %v639 = vsel %vm636, %v638, %v634
    %v640 = vmul.f32 %v574, %v639
    %v641 = vrcp.pop %v595
    %v642 = vmul.f32 %v595, %v641
    %v643 = vsub.f32 1.0, %v642
    %v644 = vmul.f32 %v641, %v643
    %v645 = vadd.f32 %v641, %v644
    %vm646 = vweird.f32 %v595
    %vm647 = vweird.f32 %v641
    %vm648 = vmor %vm646, %vm647
    %v649 = vsel %vm648, %v641, %v645
    %v650 = vand.u32 2147483647, %v595
    %vm651 = vcmp.eq.f32.partialorder %v650, 8.507059e+37
    %v652 = vand.u32 %v595, 2147483648
    %v653 = vor.u32 1.1754944e-38, %v652
    %v654 = vsel %vm651, %v653, %v649
    %v655 = vmul.f32 %v576, %v654
    %v656 = vrcp.pop %v598
    %v657 = vmul.f32 %v598, %v656
    %v658 = vsub.f32 1.0, %v657
    %v659 = vmul.f32 %v656, %v658
    %v660 = vadd.f32 %v656, %v659
    %vm661 = vweird.f32 %v598
    %vm662 = vweird.f32 %v656
    %vm663 = vmor %vm661, %vm662
    %v664 = vsel %vm663, %v656, %v660
    %v665 = vand.u32 2147483647, %v598
    %vm666 = vcmp.eq.f32.partialorder %v665, 8.507059e+37
    %v667 = vand.u32 %v598, 2147483648
    %v668 = vor.u32 1.1754944e-38, %v667
    %v669 = vsel %vm666, %v668, %v664
    %v670 = vmul.f32 %v578, %v669
    %v671 = vrcp.pop %v601
    %v672 = vmul.f32 %v601, %v671
    %v673 = vsub.f32 1.0, %v672
    %v674 = vmul.f32 %v671, %v673
    %v675 = vadd.f32 %v671, %v674
    %vm676 = vweird.f32 %v601
    %vm677 = vweird.f32 %v671
    %vm678 = vmor %vm676, %vm677
    %v679 = vsel %vm678, %v671, %v675
    %v680 = vand.u32 2147483647, %v601
    %vm681 = vcmp.eq.f32.partialorder %v680, 8.507059e+37
    %v682 = vand.u32 %v601, 2147483648
    %v683 = vor.u32 1.1754944e-38, %v682
    %v684 = vsel %vm681, %v683, %v679
    %v685 = vmul.f32 %v580, %v684
    %v686 = vrcp.pop %v604
    %v687 = vmul.f32 %v604, %v686
    %v688 = vsub.f32 1.0, %v687
    %v689 = vmul.f32 %v686, %v688
    %v690 = vadd.f32 %v686, %v689
    %vm691 = vweird.f32 %v604
    %vm692 = vweird.f32 %v686
    %vm693 = vmor %vm691, %vm692
    %v694 = vsel %vm693, %v686, %v690
    %v695 = vand.u32 2147483647, %v604
    %vm696 = vcmp.eq.f32.partialorder %v695, 8.507059e+37
    %v697 = vand.u32 %v604, 2147483648
    %v698 = vor.u32 1.1754944e-38, %v697
    %v699 = vsel %vm696, %v698, %v694
    %v700 = vmul.f32 %v582, %v699
    %v701 = vrcp.pop %v607
    %v702 = vmul.f32 %v607, %v701
    %v703 = vsub.f32 1.0, %v702
    %v704 = vmul.f32 %v701, %v703
    %v705 = vadd.f32 %v701, %v704
    %vm706 = vweird.f32 %v607
    %vm707 = vweird.f32 %v701
    %vm708 = vmor %vm706, %vm707
    %v709 = vsel %vm708, %v701, %v705
    %v710 = vand.u32 2147483647, %v607
    %vm711 = vcmp.eq.f32.partialorder %v710, 8.507059e+37
    %v712 = vand.u32 %v607, 2147483648
    %v713 = vor.u32 1.1754944e-38, %v712
    %v714 = vsel %vm711, %v713, %v709
    %v715 = vmul.f32 %v584, %v714
    %v716 = vrcp.pop %v610
    %v717 = vmul.f32 %v610, %v716
    %v718 = vsub.f32 1.0, %v717
    %v719 = vmul.f32 %v716, %v718
    %v720 = vadd.f32 %v716, %v719
    %vm721 = vweird.f32 %v610
    %vm722 = vweird.f32 %v716
    %vm723 = vmor %vm721, %vm722
    %v724 = vsel %vm723, %v716, %v720
    %v725 = vand.u32 2147483647, %v610
    %vm726 = vcmp.eq.f32.partialorder %v725, 8.507059e+37
    %v727 = vand.u32 %v610, 2147483648
    %v728 = vor.u32 1.1754944e-38, %v727
    %v729 = vsel %vm726, %v728, %v724
    %v730 = vmul.f32 %v586, %v729
    %v731 = vld [vmem:[#allocation5 + $0x370] sm:$0xff]
    %v732 = vld [vmem:[#allocation5 + $0x378] sm:$0xff]
    %v733 = vld [vmem:[#allocation5 + $0x380] sm:$0xff]
    %v734 = vld [vmem:[#allocation5 + $0x388] sm:$0xff]
    %v735 = vld [vmem:[#allocation5 + $0x390] sm:$0xff]
    %v736 = vld [vmem:[#allocation5 + $0x398] sm:$0xff]
    %v737 = vld [vmem:[#allocation5 + $0x3a0] sm:$0xff]
    %v738 = vld [vmem:[#allocation5 + $0x3a8] sm:$0xff]
    %v740 = vsel %vm538, %v625, 0
    %v743 = vsel %vm538, %v640, 0
    %v746 = vsel %vm538, %v655, 0
    %v749 = vsel %vm538, %v670, 0
    %v752 = vsel %vm538, %v685, 0
    %v755 = vsel %vm538, %v700, 0
    %v758 = vsel %vm538, %v715, 0
    %v761 = vsel %vm538, %v730, 0
    %763 = vmatpush.msra.mxu0 0.0
    %764 = vmatpush.msra.mxu0 0.0
    %765 = vmatpush.msra.mxu0 0.0
    %766 = vmatpush.msra.mxu0 0.0
    %767 = vmatpush.msra.mxu0 0.0
    %768 = vmatpush.msra.mxu0 0.0
    %769 = vmatpush.msra.mxu0 0.0
    %770 = vmatpush.msra.mxu0 0.0
    %771 = vmatpush.msra.mxu0 %v738
    %772 = vmatpush.msra.mxu0 %v737
    %773 = vmatpush.msra.mxu0 %v736
    %774 = vmatpush.msra.mxu0 %v735
    %775 = vmatpush.msra.mxu0 %v734
    %776 = vmatpush.msra.mxu0 %v733
    %777 = vmatpush.msra.mxu0 %v732
    %778 = vmatpush.msra.mxu0 %v731
    %779 = vmatmul.f32.gmra.mxu0 %v740
    %v780 = vpop.f32.mrf.mxu0
    %v781 = vadd.f32 0.0, %v780
    %782 = vmatmul.f32.gmra.mxu0 %v743
    %v783 = vpop.f32.mrf.mxu0
    %v784 = vadd.f32 0.0, %v783
    %785 = vmatmul.f32.gmra.mxu0 %v746
    %v786 = vpop.f32.mrf.mxu0
    %v787 = vadd.f32 0.0, %v786
    %788 = vmatmul.f32.gmra.mxu0 %v749
    %v789 = vpop.f32.mrf.mxu0
    %v790 = vadd.f32 0.0, %v789
    %791 = vmatmul.f32.gmra.mxu0 %v752
    %v792 = vpop.f32.mrf.mxu0
    %v793 = vadd.f32 0.0, %v792
    %794 = vmatmul.f32.gmra.mxu0 %v755
    %v795 = vpop.f32.mrf.mxu0
    %v796 = vadd.f32 0.0, %v795
    %797 = vmatmul.f32.gmra.mxu0 %v758
    %v798 = vpop.f32.mrf.mxu0
    %v799 = vadd.f32 0.0, %v798
    %800 = vmatmul.f32.gmra.mxu0 %v761
    %v801 = vpop.f32.mrf.mxu0
    %v802 = vadd.f32 0.0, %v801
    %803 = vdwg.mxu0
    %v804 = vmul.f32 %v781, %v358
    %v805 = vmul.f32 %v784, %v359
    %v806 = vmul.f32 %v787, %v360
    %v807 = vmul.f32 %v790, %v361
    %v808 = vmul.f32 %v793, %v362
    %v809 = vmul.f32 %v796, %v363
    %v810 = vmul.f32 %v799, %v364
    %v811 = vmul.f32 %v802, %v365
    %v812 = vld [vmem:[#allocation5 + $0x3b0] sm:$0xff]
    %v813 = vld [vmem:[#allocation5 + $0x3b8] sm:$0xff]
    %v814 = vld [vmem:[#allocation5 + $0x3c0] sm:$0xff]
    %v815 = vld [vmem:[#allocation5 + $0x3c8] sm:$0xff]
    %v816 = vld [vmem:[#allocation5 + $0x3d0] sm:$0xff]
    %v817 = vld [vmem:[#allocation5 + $0x3d8] sm:$0xff]
    %v818 = vld [vmem:[#allocation5 + $0x3e0] sm:$0xff]
    %v819 = vld [vmem:[#allocation5 + $0x3e8] sm:$0xff]
    %v820 = vld [vmem:[#allocation5 + $0x3f0] sm:$0xff]
    %v822 = vsel %vm383, %v804, 0
    %v825 = vsel %vm383, %v805, 0
    %v828 = vsel %vm383, %v806, 0
    %v831 = vsel %vm383, %v807, 0
    %v834 = vsel %vm383, %v808, 0
    %v837 = vsel %vm383, %v809, 0
    %v840 = vsel %vm383, %v810, 0
    %v843 = vsel %vm383, %v811, 0
    %845 = vmatpush.msra.mxu0 0.0
    %846 = vmatpush.msra.mxu0 0.0
    %847 = vmatpush.msra.mxu0 0.0
    %848 = vmatpush.msra.mxu0 0.0
    %849 = vmatpush.msra.mxu0 0.0
    %850 = vmatpush.msra.mxu0 0.0
    %851 = vmatpush.msra.mxu0 0.0
    %852 = vmatpush.msra.mxu0 %v820
    %853 = vmatpush.msra.mxu0 %v819
    %854 = vmatpush.msra.mxu0 %v818
    %855 = vmatpush.msra.mxu0 %v817
    %856 = vmatpush.msra.mxu0 %v816
    %857 = vmatpush.msra.mxu0 %v815
    %858 = vmatpush.msra.mxu0 %v814
    %859 = vmatpush.msra.mxu0 %v813
    %860 = vmatpush.msra.mxu0 %v812
    %861 = vmatmul.f32.gmra.mxu0 %v822
    %v862 = vpop.f32.mrf.mxu0
    %v863 = vadd.f32 0.0, %v862
    %864 = vmatmul.f32.gmra.mxu0 %v825
    %v865 = vpop.f32.mrf.mxu0
    %v866 = vadd.f32 0.0, %v865
    %867 = vmatmul.f32.gmra.mxu0 %v828
    %v868 = vpop.f32.mrf.mxu0
    %v869 = vadd.f32 0.0, %v868
    %870 = vmatmul.f32.gmra.mxu0 %v831
    %v871 = vpop.f32.mrf.mxu0
    %v872 = vadd.f32 0.0, %v871
    %873 = vmatmul.f32.gmra.mxu0 %v834
    %v874 = vpop.f32.mrf.mxu0
    %v875 = vadd.f32 0.0, %v874
    %876 = vmatmul.f32.gmra.mxu0 %v837
    %v877 = vpop.f32.mrf.mxu0
    %v878 = vadd.f32 0.0, %v877
    %879 = vmatmul.f32.gmra.mxu0 %v840
    %v880 = vpop.f32.mrf.mxu0
    %v881 = vadd.f32 0.0, %v880
    %882 = vmatmul.f32.gmra.mxu0 %v843
    %v883 = vpop.f32.mrf.mxu0
    %v884 = vadd.f32 0.0, %v883
    %885 = vdwg.mxu0
    %886 = vmatpush.msra.mxu0 0.0
    %887 = vmatpush.msra.mxu0 0.0
    %888 = vmatpush.msra.mxu0 0.0
    %889 = vmatpush.msra.mxu0 0.0
    %890 = vmatpush.msra.mxu0 0.0
    %891 = vmatpush.msra.mxu0 0.0
    %892 = vmatpush.msra.mxu0 0.0
    %893 = vmatpush.msra.mxu0 0.0
    %894 = vmatpush.msra.mxu0 %v289
    %895 = vmatpush.msra.mxu0 %v286
    %896 = vmatpush.msra.mxu0 %v283
    %897 = vmatpush.msra.mxu0 %v280
    %898 = vmatpush.msra.mxu0 %v277
    %899 = vmatpush.msra.mxu0 %v274
    %900 = vmatpush.msra.mxu0 %v271
    %901 = vmatpush.msra.mxu0 %v268
    %902 = vmatmul.f32.gmra.mxu0 %v740
    %v903 = vpop.f32.mrf.mxu0
    %v904 = vadd.f32 %v863, %v903
    %905 = vmatmul.f32.gmra.mxu0 %v743
    %v906 = vpop.f32.mrf.mxu0
    %v907 = vadd.f32 %v866, %v906
    %908 = vmatmul.f32.gmra.mxu0 %v746
    %v909 = vpop.f32.mrf.mxu0
    %v910 = vadd.f32 %v869, %v909
    %911 = vmatmul.f32.gmra.mxu0 %v749
    %v912 = vpop.f32.mrf.mxu0
    %v913 = vadd.f32 %v872, %v912
    %914 = vmatmul.f32.gmra.mxu0 %v752
    %v915 = vpop.f32.mrf.mxu0
    %v916 = vadd.f32 %v875, %v915
    %917 = vmatmul.f32.gmra.mxu0 %v755
    %v918 = vpop.f32.mrf.mxu0
    %v919 = vadd.f32 %v878, %v918
    %920 = vmatmul.f32.gmra.mxu0 %v758
    %v921 = vpop.f32.mrf.mxu0
    %v922 = vadd.f32 %v881, %v921
    %923 = vmatmul.f32.gmra.mxu0 %v761
    %v924 = vpop.f32.mrf.mxu0
    %v925 = vadd.f32 %v884, %v924
    %926 = vdwg.mxu0
    %v927 = vld [vmem:[#allocation5 + $0x3f8] sm:$0xff]
    %v928 = vld [vmem:[#allocation5 + $0x400] sm:$0xff]
    %v929 = vld [vmem:[#allocation5 + $0x408] sm:$0xff]
    %v930 = vld [vmem:[#allocation5 + $0x410] sm:$0xff]
    %v931 = vld [vmem:[#allocation5 + $0x418] sm:$0xff]
    %v933 = vsel %vm292, %v904, 0
    %v936 = vsel %vm292, %v907, 0
    %938 = vmatpush.msra.mxu0 0.0
    %939 = vmatpush.msra.mxu0 0.0
    %940 = vmatpush.msra.mxu0 0.0
    %941 = vmatpush.msra.mxu0 0.0
    %942 = vmatpush.msra.mxu0 0.0
    %943 = vmatpush.msra.mxu0 0.0
    %944 = vmatpush.msra.mxu0 0.0
    %945 = vmatpush.msra.mxu0 0.0
    %946 = vmatpush.msra.mxu0 0.0
    %947 = vmatpush.msra.mxu0 0.0
    %948 = vmatpush.msra.mxu0 0.0
    %949 = vmatpush.msra.mxu0 0.0
    %950 = vmatpush.msra.mxu0 0.0
    %951 = vmatpush.msra.mxu0 0.0
    %952 = vmatpush.msra.mxu0 0.0
    %953 = vmatpush.msra.mxu0 %v927
    %954 = vmatmul.f32.gmra.mxu0 %v933
    %v955 = vpop.f32.mrf.mxu0
    %v956 = vadd.f32 0.0, %v955
    %957 = vmatmul.f32.gmra.mxu0 %v936
    %v958 = vpop.f32.mrf.mxu0
    %v959 = vadd.f32 0.0, %v958
    %960 = vdwg.mxu0
    %v961 = vperm.slane %v931, 0
    %v962 = vadd.f32 %v961, %v956
    %v963 = vadd.f32 %v961, %v959
    %v965 = vsel %vm292, %v910, 0
    %v968 = vsel %vm292, %v913, 0
    %970 = vmatpush.msra.mxu0 0.0
    %971 = vmatpush.msra.mxu0 0.0
    %972 = vmatpush.msra.mxu0 0.0
    %973 = vmatpush.msra.mxu0 0.0
    %974 = vmatpush.msra.mxu0 0.0
    %975 = vmatpush.msra.mxu0 0.0
    %976 = vmatpush.msra.mxu0 0.0
    %977 = vmatpush.msra.mxu0 0.0
    %978 = vmatpush.msra.mxu0 0.0
    %979 = vmatpush.msra.mxu0 0.0
    %980 = vmatpush.msra.mxu0 0.0
    %981 = vmatpush.msra.mxu0 0.0
    %982 = vmatpush.msra.mxu0 0.0
    %983 = vmatpush.msra.mxu0 0.0
    %984 = vmatpush.msra.mxu0 0.0
    %985 = vmatpush.msra.mxu0 %v928
    %986 = vmatmul.f32.gmra.mxu0 %v965
    %v987 = vpop.f32.mrf.mxu0
    %v988 = vadd.f32 0.0, %v987
    %989 = vmatmul.f32.gmra.mxu0 %v968
    %v990 = vpop.f32.mrf.mxu0
    %v991 = vadd.f32 0.0, %v990
    %992 = vdwg.mxu0
    %v993 = vadd.f32 %v962, %v988
    %v994 = vadd.f32 %v963, %v991
    %v996 = vsel %vm292, %v916, 0
    %v999 = vsel %vm292, %v919, 0
    %1001 = vmatpush.msra.mxu0 0.0
    %1002 = vmatpush.msra.mxu0 0.0
    %1003 = vmatpush.msra.mxu0 0.0
    %1004 = vmatpush.msra.mxu0 0.0
    %1005 = vmatpush.msra.mxu0 0.0
    %1006 = vmatpush.msra.mxu0 0.0
    %1007 = vmatpush.msra.mxu0 0.0
    %1008 = vmatpush.msra.mxu0 0.0
    %1009 = vmatpush.msra.mxu0 0.0
    %1010 = vmatpush.msra.mxu0 0.0
    %1011 = vmatpush.msra.mxu0 0.0
    %1012 = vmatpush.msra.mxu0 0.0
    %1013 = vmatpush.msra.mxu0 0.0
    %1014 = vmatpush.msra.mxu0 0.0
    %1015 = vmatpush.msra.mxu0 0.0
    %1016 = vmatpush.msra.mxu0 %v929
    %1017 = vmatmul.f32.gmra.mxu0 %v996
    %v1018 = vpop.f32.mrf.mxu0
    %v1019 = vadd.f32 0.0, %v1018
    %1020 = vmatmul.f32.gmra.mxu0 %v999
    %v1021 = vpop.f32.mrf.mxu0
    %v1022 = vadd.f32 0.0, %v1021
    %1023 = vdwg.mxu0
    %v1024 = vadd.f32 %v993, %v1019
    %v1025 = vadd.f32 %v994, %v1022
    %v1027 = vsel %vm292, %v922, 0
    %v1030 = vsel %vm292, %v925, 0
    %1032 = vmatpush.msra.mxu0 0.0
    %1033 = vmatpush.msra.mxu0 0.0
    %1034 = vmatpush.msra.mxu0 0.0
    %1035 = vmatpush.msra.mxu0 0.0
    %1036 = vmatpush.msra.mxu0 0.0
    %1037 = vmatpush.msra.mxu0 0.0
    %1038 = vmatpush.msra.mxu0 0.0
    %1039 = vmatpush.msra.mxu0 0.0
    %1040 = vmatpush.msra.mxu0 0.0
    %1041 = vmatpush.msra.mxu0 0.0
    %1042 = vmatpush.msra.mxu0 0.0
    %1043 = vmatpush.msra.mxu0 0.0
    %1044 = vmatpush.msra.mxu0 0.0
    %1045 = vmatpush.msra.mxu0 0.0
    %1046 = vmatpush.msra.mxu0 0.0
    %1047 = vmatpush.msra.mxu0 %v930
    %1048 = vmatmul.f32.gmra.mxu0 %v1027
    %v1049 = vpop.f32.mrf.mxu0
    %v1050 = vadd.f32 0.0, %v1049
    %1051 = vmatmul.f32.gmra.mxu0 %v1030
    %v1052 = vpop.f32.mrf.mxu0
    %v1053 = vadd.f32 0.0, %v1052
    %1054 = vdwg.mxu0
    %v1055 = vadd.f32 %v1024, %v1050
    %v1056 = vadd.f32 %v1025, %v1053
    %v1057 = vadd.f32 %v44, %v1055
    %v1058 = vadd.f32 %v45, %v1056
    %v1059 = vsel %vm50, %v1057, 0.0
    %1060 = vadd.xlane.f32.xlu0 %v1059
    %v1061 = vpop.xlane.xlu0 %1060
    %v1062 = vsel %vm50, %v1058, 0.0
    %1063 = vadd.xlane.f32.xlu0 %v1062
    %v1064 = vpop.xlane.xlu0 %1063
    %v1065 = vrcp.pop 32.0
    %v1066 = vmul.f32 32.0, %v1065
    %v1067 = vsub.f32 1.0, %v1066
    %v1068 = vmul.f32 %v1065, %v1067
    %v1069 = vadd.f32 %v1065, %v1068
    %vm1070 = vweird.f32 %v1065
    %v1071 = vsel %vm1070, %v1065, %v1069
    %v1072 = vmul.f32 %v1061, %v1071
    %v1073 = vmul.f32 %v1064, %v1071
    %v1074 = vsub.f32 %v1057, %v1072
    %v1075 = vsub.f32 %v1058, %v1073
    %v1076 = vmul.f32 %v1074, %v1074
    %v1077 = vmul.f32 %v1075, %v1075
    %v1078 = vsel %vm50, %v1076, 0.0
    %1079 = vadd.xlane.f32.xlu0 %v1078
    %v1080 = vpop.xlane.xlu0 %1079
    %v1081 = vsel %vm50, %v1077, 0.0
    %1082 = vadd.xlane.f32.xlu0 %v1081
    %v1083 = vpop.xlane.xlu0 %1082
    %v1084 = vmul.f32 %v1080, %v1071
    %v1085 = vmul.f32 %v1083, %v1071
    %v1086 = vadd.f32 %v1084, 1e-05
    %v1087 = vadd.f32 %v1085, 1e-05
    %v1088 = vrsqrt.pop %v1086
    %v1089 = vmul.f32 %v1088, %v1086
    %v1090 = vmul.f32 %v1089, %v1088
    %v1091 = vmul.f32 0.5, %v1090
    %v1092 = vsub.f32 1.5, %v1091
    %v1093 = vmul.f32 %v1088, %v1092
    %vm1094 = vweird.f32 %v1086
    %vm1095 = vweird.f32 %v1088
    %vm1096 = vmor %vm1094, %vm1095
    %v1097 = vsel %vm1096, %v1088, %v1093
    %v1098 = vrsqrt.pop %v1087
    %v1099 = vmul.f32 %v1098, %v1087
    %v1100 = vmul.f32 %v1099, %v1098
    %v1101 = vmul.f32 0.5, %v1100
    %v1102 = vsub.f32 1.5, %v1101
    %v1103 = vmul.f32 %v1098, %v1102
    %vm1104 = vweird.f32 %v1087
    %vm1105 = vweird.f32 %v1098
    %vm1106 = vmor %vm1104, %vm1105
    %v1107 = vsel %vm1106, %v1098, %v1103
    %v1108 = vmul.f32 %v1074, %v1097
    %v1109 = vmul.f32 %v1075, %v1107
    %v1110 = vperm.slane %v931, 2
    %v1111 = vmul.f32 %v1108, %v1110
    %v1112 = vmul.f32 %v1109, %v1110
    %v1113 = vperm.slane %v931, 3
    %v1114 = vadd.f32 %v1111, %v1113
    %v1115 = vadd.f32 %v1112, %v1113
    %v1116 = vld [vmem:[#allocation5 + $0x420] sm:$0xff]
    %v1117 = vld [vmem:[#allocation5 + $0x428] sm:$0xff]
    %v1118 = vld [vmem:[#allocation5 + $0x430] sm:$0xff]
    %v1119 = vld [vmem:[#allocation5 + $0x438] sm:$0xff]
    %v1120 = vperm.slane %v931, 1
    %v1122 = vsel %vm50, %v1114, 0
    %v1125 = vsel %vm50, %v1115, 0
    %1127 = vmatpush.msra.mxu0 0.0
    %1128 = vmatpush.msra.mxu0 0.0
    %1129 = vmatpush.msra.mxu0 0.0
    %1130 = vmatpush.msra.mxu0 0.0
    %1131 = vmatpush.msra.mxu0 0.0
    %1132 = vmatpush.msra.mxu0 0.0
    %1133 = vmatpush.msra.mxu0 0.0
    %1134 = vmatpush.msra.mxu0 0.0
    %1135 = vmatpush.msra.mxu0 0.0
    %1136 = vmatpush.msra.mxu0 0.0
    %1137 = vmatpush.msra.mxu0 0.0
    %1138 = vmatpush.msra.mxu0 0.0
    %1139 = vmatpush.msra.mxu0 %v1119
    %1140 = vmatpush.msra.mxu0 %v1118
    %1141 = vmatpush.msra.mxu0 %v1117
    %1142 = vmatpush.msra.mxu0 %v1116
    %1143 = vmatmul.f32.gmra.mxu0 %v1122
    %v1144 = vpop.f32.mrf.mxu0
    %v1145 = vadd.f32 %v1120, %v1144
    %1146 = vmatmul.f32.gmra.mxu0 %v1125
    %v1147 = vpop.f32.mrf.mxu0
    %v1148 = vadd.f32 %v1120, %v1147
    %1149 = vdwg.mxu0
    %v1150 = vmax.f32 %v1145, 0.0
    %v1151 = vmax.f32 %v1148, 0.0
    %v1152 = vld [vmem:[#allocation5 + $0x440] sm:$0xff]
    %v1153 = vld [vmem:[#allocation5 + $0x448] sm:$0xff]
    %v1154 = vld [vmem:[#allocation5 + $0x450] sm:$0xff]
    %v1155 = vld [vmem:[#allocation5 + $0x458] sm:$0xff]
    %v1156 = vld [vmem:[#allocation5 + $0x460] sm:$0xff]
    %v1157 = vld [vmem:[#allocation5 + $0x468] sm:$0xff]
    %v1158 = vld [vmem:[#allocation5 + $0x470] sm:$0xff]
    %v1159 = vld [vmem:[#allocation5 + $0x478] sm:$0xff]
    %v1160 = vperm.slane %v931, 4
    %v1162 = vsel %vm538, %v1150, 0
    %v1165 = vsel %vm538, %v1151, 0
    %1167 = vmatpush.msra.mxu0 0.0
    %1168 = vmatpush.msra.mxu0 0.0
    %1169 = vmatpush.msra.mxu0 0.0
    %1170 = vmatpush.msra.mxu0 0.0
    %1171 = vmatpush.msra.mxu0 0.0
    %1172 = vmatpush.msra.mxu0 0.0
    %1173 = vmatpush.msra.mxu0 0.0
    %1174 = vmatpush.msra.mxu0 0.0
    %1175 = vmatpush.msra.mxu0 %v1159
    %1176 = vmatpush.msra.mxu0 %v1158
    %1177 = vmatpush.msra.mxu0 %v1157
    %1178 = vmatpush.msra.mxu0 %v1156
    %1179 = vmatpush.msra.mxu0 %v1155
    %1180 = vmatpush.msra.mxu0 %v1154
    %1181 = vmatpush.msra.mxu0 %v1153
    %1182 = vmatpush.msra.mxu0 %v1152
    %1183 = vmatmul.f32.gmra.mxu0 %v1162
    %v1184 = vpop.f32.mrf.mxu0
    %v1185 = vadd.f32 %v1160, %v1184
    %1186 = vmatmul.f32.gmra.mxu0 %v1165
    %v1187 = vpop.f32.mrf.mxu0
    %v1188 = vadd.f32 %v1160, %v1187
    %1189 = vdwg.mxu0
    %v1190 = vadd.f32 %v1114, %v1185
    %v1191 = vadd.f32 %v1115, %v1188
    %v1192 = vsel %vm50, %v1190, 0.0
    %1193 = vadd.xlane.f32.xlu0 %v1192
    %v1194 = vpop.xlane.xlu0 %1193
    %v1195 = vsel %vm50, %v1191, 0.0
    %1196 = vadd.xlane.f32.xlu0 %v1195
    %v1197 = vpop.xlane.xlu0 %1196
    %v1198 = vmul.f32 %v1194, %v1071
    %v1199 = vmul.f32 %v1197, %v1071
    %v1200 = vsub.f32 %v1190, %v1198
    %v1201 = vsub.f32 %v1191, %v1199
    %v1202 = vmul.f32 %v1200, %v1200
    %v1203 = vmul.f32 %v1201, %v1201
    %v1204 = vsel %vm50, %v1202, 0.0
    %1205 = vadd.xlane.f32.xlu0 %v1204
    %v1206 = vpop.xlane.xlu0 %1205
    %v1207 = vsel %vm50, %v1203, 0.0
    %1208 = vadd.xlane.f32.xlu0 %v1207
    %v1209 = vpop.xlane.xlu0 %1208
    %v1210 = vmul.f32 %v1206, %v1071
    %v1211 = vmul.f32 %v1209, %v1071
    %v1212 = vadd.f32 %v1210, 1e-05
    %v1213 = vadd.f32 %v1211, 1e-05
    %v1214 = vrsqrt.pop %v1212
    %v1215 = vmul.f32 %v1214, %v1212
    %v1216 = vmul.f32 %v1215, %v1214
    %v1217 = vmul.f32 0.5, %v1216
    %v1218 = vsub.f32 1.5, %v1217
    %v1219 = vmul.f32 %v1214, %v1218
    %vm1220 = vweird.f32 %v1212
    %vm1221 = vweird.f32 %v1214
    %vm1222 = vmor %vm1220, %vm1221
    %v1223 = vsel %vm1222, %v1214, %v1219
    %v1224 = vrsqrt.pop %v1213
    %v1225 = vmul.f32 %v1224, %v1213
    %v1226 = vmul.f32 %v1225, %v1224
    %v1227 = vmul.f32 0.5, %v1226
    %v1228 = vsub.f32 1.5, %v1227
    %v1229 = vmul.f32 %v1224, %v1228
    %vm1230 = vweird.f32 %v1213
    %vm1231 = vweird.f32 %v1224
    %vm1232 = vmor %vm1230, %vm1231
    %v1233 = vsel %vm1232, %v1224, %v1229
    %v1234 = vmul.f32 %v1200, %v1223
    %v1235 = vmul.f32 %v1201, %v1233
    %v1236 = vperm.slane %v931, 5
    %v1237 = vmul.f32 %v1234, %v1236
    %v1238 = vmul.f32 %v1235, %v1236
    %v1239 = vperm.slane %v931, 6
    %v1240 = vadd.f32 %v1237, %v1239
    %v1241 = vadd.f32 %v1238, %v1239
    %1242 = vst.msk [vmem:[#allocation7] sm:$0xff] %vm50, %v1240
    %1243 = vst.msk [vmem:[#allocation7 + $0x8] sm:$0xff] %vm50, %v1241
    // Predicated region
    $region18: #{forward.1} parent=1 // pred_check
      _
    $region19: #{forward.1} parent=1 // pred_check_branch
      %1245 = sbr.rel (0) target = $region21
    $region20: #{forward.1} parent=1 // pred_region
      %1247 = vsyncadd [#allocation4], 0
      %s1248 = sshll.u32 [#allocation7], 4
      %s1249 = int_to_ptr.vmem [resolvable:$true] %s1248
      %s1250 = sshll.u32 %s2, 4
      %s1251 = int_to_ptr.hbm [resolvable:$true] %s1250
      %1256 = dma.vmem_to_hbm [thread:$0]  %s1249, 256, %s1251, [#allocation4], 128, 128, 8
    $region21: #{forward.1} parent=1 // pred_fallthru
      _
    // Predicated region
    $region22: #{forward.1} parent=1 // pred_check
      _
    $region23: #{forward.1} parent=1 // pred_check_branch
      %1258 = sbr.rel (0) target = $region25
    $region24: #{forward.1} parent=1 // pred_region
      %1260 = dma.done [#allocation4], 256
    $region25: #{forward.1} parent=1 // pred_fallthru
      _
    %1261 = vsyncpa [#allocation3], 1
    %1262 = vsyncpa [#allocation6], 1
    %1263 = vsyncpa [#allocation4], 1

</llo_original>
